<compile_context>
chip_gen: v7x
topology: tpu7x:2x2x1
jax: 0.10.0
libtpu: 0.0.40
codegen_flags: <defaults>
</compile_context>

<pallas_src>
import functools
import math

import jax
import jax.numpy as jnp
from jax import lax
from jax.experimental import pallas as pl
from jax.experimental.pallas import tpu as pltpu

D_MODEL = 32
N_HEADS = 4
HEAD_SIZE = D_MODEL // N_HEADS
R_MLP = 4
D_HIDDEN = R_MLP * D_MODEL
LN_EPS = 1e-5
_NEG_BIG = -1e30


def _layernorm_noaffine(x):
    mu = jnp.mean(x, axis=-1, keepdims=True)
    xc = x - mu
    var = jnp.mean(xc * xc, axis=-1, keepdims=True)
    return xc * lax.rsqrt(var + LN_EPS)


def _layernorm(x, w, b):
    return _layernorm_noaffine(x) * w + b


def _softmax_last(x):
    m = jnp.max(x, axis=-1, keepdims=True)
    e = jnp.exp(x - m)
    # approx reciprocal runs on the otherwise-idle EUP slot.
    return e * pl.reciprocal(jnp.sum(e, axis=-1, keepdims=True), approx=True)


def _gelu_exact(x):
    # PyTorch nn.GELU() default: exact erf formulation.
    return 0.5 * x * (1.0 + lax.erf(x / math.sqrt(2.0)))


def encoder_kernel(x_ref,
                   wqkv_ref, bqkv_ref,
                   wo_ref, bo_ref,
                   ln2w_ref, ln2b_ref,
                   w1_ref, b1_ref, w2_ref, b2_ref,
                   o_ref, *, seq_len):
    rows, d = x_ref.shape                      # rows = bt * seq_len (row-packed batch)
    bt = rows // seq_len

    x = x_ref[...]                             # (rows, D)

    # ---- LayerNorm 1 (affine folded into the QKV weights wrapper-side) ----
    h = _layernorm_noaffine(x)

    # ---- fused QKV projection: one (rows, D) @ (D, 3D) matmul ----
    qkv = jnp.dot(h, wqkv_ref[...], preferred_element_type=jnp.float32) + bqkv_ref[0]
    q = qkv[:, 0 * d:1 * d]
    k = qkv[:, 1 * d:2 * d]
    v = qkv[:, 2 * d:3 * d]

    # Block-diagonal additive bias, built ONCE from thin iotas (only needed when more
    # than one sequence is packed per block).
    if bt > 1:
        row_seq = lax.broadcasted_iota(jnp.int32, (rows, 1), 0) // seq_len
        col_seq = lax.broadcasted_iota(jnp.int32, (1, rows), 1) // seq_len
        bias = jnp.where(row_seq == col_seq, 0.0, _NEG_BIG).astype(jnp.float32)
    else:
        bias = None

    lane = lax.broadcasted_iota(jnp.int32, (1, d), 1)
    scale = 1.0 / math.sqrt(HEAD_SIZE)

    # Per-head attention via lane masks: zeroing the non-head lanes of q (and v)
    # keeps full 32-lane MXU contractions and avoids 8-lane slices.  The softmax
    # scale is folded into the q-mask; the sequence mask is a single additive bias.
    ctx = jnp.zeros((rows, d), jnp.float32)
    for hd in range(N_HEADS):
        lo, hi = hd * HEAD_SIZE, (hd + 1) * HEAD_SIZE
        in_head = ((lane >= lo) & (lane < hi)).astype(jnp.float32)   # (1, D)
        s = lax.dot_general(q * (in_head * scale), k, (((1,), (1,)), ((), ())),
                            preferred_element_type=jnp.float32)
        if bias is not None:
            s = s + bias
        p = _softmax_last(s)
        ctx = ctx + jnp.dot(p, v * in_head, preferred_element_type=jnp.float32)

    attn = jnp.dot(ctx, wo_ref[...], preferred_element_type=jnp.float32) + bo_ref[0]

    # residual 1
    y = attn + x

    # ---- LayerNorm 2 (affine kept: y2 feeds the second residual) ----
    y2 = _layernorm(y, ln2w_ref[0], ln2b_ref[0])

    # ---- MLP ----
    z = jnp.dot(y2, w1_ref[...], preferred_element_type=jnp.float32) + b1_ref[0]
    z = _gelu_exact(z)
    z = jnp.dot(z, w2_ref[...], preferred_element_type=jnp.float32) + b2_ref[0]

    # residual 2: the module adds the *normalized* tensor (mlp(out) + out).
    # Single full-width store (no per-timestep masked-store loop).
    o_ref[...] = (z + y2).astype(o_ref.dtype)


def _plan_packing(B, T, target_rows=128):
    """Pick bt (sequences packed per grid step) and padded batch B_pad.

    Constraints:
      * rows = bt*T ~ target_rows (amortize ~0.35us/step, fill MXU M, keep the
        (rows, rows) attention intermediates at ~16 vregs -> no spills).
      * rows % 8 == 0 whenever nb > 1 (sublane constraint on the BlockSpec).
      * nb >= 2 when the batch allows it (v7x has 2 TensorCores to shard over).
    Awkward/prime batches are handled by padding B up to a multiple of bt.
    """
    bt_unit = 8 // math.gcd(T, 8)               # smallest bt with (bt*T) % 8 == 0
    if T * bt_unit <= target_rows:
        bt = max(bt_unit, (target_rows // (bt_unit * T)) * bt_unit)
    else:
        bt = bt_unit
    if B >= 2 * bt_unit:                        # keep >= 2 grid steps (v7x megacore)
        bt = min(bt, max(bt_unit, (B // (2 * bt_unit)) * bt_unit))
    if bt >= B:
        return B, B                             # single step: full block, no padding
    B_pad = -(-B // bt) * bt
    return bt, B_pad


def transformer_encoder(x, params):
    B, T, D = x.shape
    assert D == D_MODEL
    bt, B_pad = _plan_packing(B, T)
    nb = B_pad // bt
    rows = bt * T

    # Wrapper-side layout plumbing (free XLA reshapes):
    #  * input flattened to (B*T, D), zero-padded to B_pad*T rows if needed
    #    (padded rows are self-contained sequences -> finite garbage, sliced off)
    #  * output produced as (B_pad*T, D), reshaped back afterwards
    x2 = x.reshape(B * T, D)
    if B_pad != B:
        x2 = jnp.pad(x2, ((0, (B_pad - B) * T), (0, 0)))

    # Fused QKV projection with the LN1 affine folded in:
    #   (xn*g + b) @ W + c  ==  xn @ (diag(g) W) + (b @ W + c)
    wqkv0 = jnp.concatenate([params["wq"], params["wk"], params["wv"]], axis=1)  # (D,3D)
    bqkv0 = jnp.concatenate([params["bq"], params["bk"], params["bv"]], axis=1)  # (1,3D)
    wqkv = params["ln1_w"].reshape(D, 1) * wqkv0
    bqkv = params["ln1_b"] @ wqkv0 + bqkv0

    weights = [
        wqkv, bqkv,
        params["wo"], params["bo"],
        params["ln2_w"], params["ln2_b"],
        params["w1"], params["b1"], params["w2"], params["b2"],
    ]

    def full_spec(a):
        nd = a.ndim
        # Weights are tiny (~80 KB total): full VMEM-resident blocks, never re-tiled.
        return pl.BlockSpec(a.shape, lambda b, _nd=nd: (0,) * _nd)

    in_specs = [pl.BlockSpec((rows, D), lambda b: (b, 0))]
    in_specs += [full_spec(w) for w in weights]

    out = pl.pallas_call(
        functools.partial(encoder_kernel, seq_len=T),
        out_shape=jax.ShapeDtypeStruct((B_pad * T, D), x.dtype),
        grid_spec=pltpu.PrefetchScalarGridSpec(
            num_scalar_prefetch=0,
            grid=(nb,),
            in_specs=in_specs,
            out_specs=pl.BlockSpec((rows, D), lambda b: (b, 0)),
        ),
        compiler_params=pltpu.CompilerParams(
            dimension_semantics=("parallel",)),
    )(x2, *weights)
    return out[:B * T].reshape(B, T, D)


# ---------------- pure-JAX reference (mirrors the PyTorch forward) ----------------
def reference_forward(x, p):
    def ln(v, w, b):
        mu = jnp.mean(v, axis=-1, keepdims=True)
        var = jnp.mean((v - mu) ** 2, axis=-1, keepdims=True)
        return (v - mu) / jnp.sqrt(var + LN_EPS) * w[0] + b[0]

    h = ln(x, p["ln1_w"], p["ln1_b"])
    q = jnp.einsum("btd,de->bte", h, p["wq"]) + p["bq"][0]
    k = jnp.einsum("btd,de->bte", h, p["wk"]) + p["bk"][0]
    v = jnp.einsum("btd,de->bte", h, p["wv"]) + p["bv"][0]
    heads = []
    for hd in range(N_HEADS):
        lo, hi = hd * HEAD_SIZE, (hd + 1) * HEAD_SIZE
        s = jnp.einsum("bqe,bte->bqt", q[..., lo:hi], k[..., lo:hi]) / math.sqrt(HEAD_SIZE)
        a = jax.nn.softmax(s, axis=-1)
        heads.append(jnp.einsum("bqt,bte->bqe", a, v[..., lo:hi]))
    cat = jnp.concatenate(heads, axis=-1)
    attn = jnp.einsum("btd,de->bte", cat, p["wo"]) + p["bo"][0]
    y = attn + x
    y2 = ln(y, p["ln2_w"], p["ln2_b"])
    z = jnp.einsum("btd,dh->bth", y2, p["w1"]) + p["b1"][0]
    z = jax.nn.gelu(z, approximate=False)
    z = jnp.einsum("bth,hd->btd", z, p["w2"]) + p["b2"][0]
    return z + y2


def make_params(key):
    ks = jax.random.split(key, 12)
    return {
        "ln1_w": jnp.ones((1, D_MODEL), jnp.float32),
        "ln1_b": jnp.zeros((1, D_MODEL), jnp.float32),
        "wq": 0.05 * jax.random.normal(ks[0], (D_MODEL, D_MODEL), jnp.float32),
        "bq": 0.01 * jax.random.normal(ks[1], (1, D_MODEL), jnp.float32),
        "wk": 0.05 * jax.random.normal(ks[2], (D_MODEL, D_MODEL), jnp.float32),
        "bk": 0.01 * jax.random.normal(ks[3], (1, D_MODEL), jnp.float32),
        "wv": 0.05 * jax.random.normal(ks[4], (D_MODEL, D_MODEL), jnp.float32),
        "bv": 0.01 * jax.random.normal(ks[5], (1, D_MODEL), jnp.float32),
        "wo": 0.05 * jax.random.normal(ks[6], (D_MODEL, D_MODEL), jnp.float32),
        "bo": 0.01 * jax.random.normal(ks[7], (1, D_MODEL), jnp.float32),
        "ln2_w": jnp.ones((1, D_MODEL), jnp.float32),
        "ln2_b": jnp.zeros((1, D_MODEL), jnp.float32),
        "w1": 0.05 * jax.random.normal(ks[8], (D_MODEL, D_HIDDEN), jnp.float32),
        "b1": 0.01 * jax.random.normal(ks[9], (1, D_HIDDEN), jnp.float32),
        "w2": 0.05 * jax.random.normal(ks[10], (D_HIDDEN, D_MODEL), jnp.float32),
        "b2": 0.01 * jax.random.normal(ks[11], (1, D_MODEL), jnp.float32),
    }


if __name__ == "__main__":
    key = jax.random.PRNGKey(0)
    kx, kx2, kp = jax.random.split(key, 3)
    params = make_params(kp)

    # Config 1: the small reference shape (B=2, T=8) -> 2 grid steps, 1 sequence each.
    x_a = jax.random.normal(kx, (2, 8, D_MODEL), jnp.float32)
    out_a = jax.block_until_ready(transformer_encoder(x_a, params))
    ref_a = jax.block_until_ready(reference_forward(x_a, params))
    assert out_a.shape == x_a.shape
    err_a = float(jnp.max(jnp.abs(out_a - ref_a)))
    assert jnp.allclose(out_a, ref_a, atol=1e-3, rtol=1e-3), err_a

    # Config 2: exercises multi-sequence row packing + block-diagonal bias (bt > 1).
    x_b = jax.random.normal(kx2, (8, 8, D_MODEL), jnp.float32)
    out_b = jax.block_until_ready(transformer_encoder(x_b, params))
    ref_b = jax.block_until_ready(reference_forward(x_b, params))
    assert out_b.shape == x_b.shape
    err_b = float(jnp.max(jnp.abs(out_b - ref_b)))
    assert jnp.allclose(out_b, ref_b, atol=1e-3, rtol=1e-3), err_b

    print("KERNEL_OK")
</pallas_src>

<mosaic_0001>
module attributes {stable_mosaic.version = 11 : i64} {
  func.func @encoder_kernel(%arg0: i32, %arg1: memref<8x32xf32, #tpu.memory_space<vmem>>, %arg2: memref<32x96xf32, #tpu.memory_space<vmem>>, %arg3: memref<1x96xf32, #tpu.memory_space<vmem>>, %arg4: memref<32x32xf32, #tpu.memory_space<vmem>>, %arg5: memref<1x32xf32, #tpu.memory_space<vmem>>, %arg6: memref<1x32xf32, #tpu.memory_space<vmem>>, %arg7: memref<1x32xf32, #tpu.memory_space<vmem>>, %arg8: memref<32x128xf32, #tpu.memory_space<vmem>>, %arg9: memref<1x128xf32, #tpu.memory_space<vmem>>, %arg10: memref<128x32xf32, #tpu.memory_space<vmem>>, %arg11: memref<1x32xf32, #tpu.memory_space<vmem>>, %arg12: memref<8x32xf32, #tpu.memory_space<vmem>>) attributes {dimension_semantics = [#tpu.dimension_semantics<parallel>], iteration_bounds = array<i64: 2>, scalar_prefetch = 0 : i64, scratch_operands = 0 : i64, tpu.core_type = #tpu.core_type<tc>, window_params = [{transform_indices = @transform_0, window_bounds = array<i64: 8, 32>}, {pipeline_mode = #tpu.pipeline_mode<synchronous>, transform_indices = @transform_1, window_bounds = array<i64: 32, 96>}, {pipeline_mode = #tpu.pipeline_mode<synchronous>, transform_indices = @transform_2, window_bounds = array<i64: 1, 96>}, {pipeline_mode = #tpu.pipeline_mode<synchronous>, transform_indices = @transform_3, window_bounds = array<i64: 32, 32>}, {pipeline_mode = #tpu.pipeline_mode<synchronous>, transform_indices = @transform_4, window_bounds = array<i64: 1, 32>}, {pipeline_mode = #tpu.pipeline_mode<synchronous>, transform_indices = @transform_5, window_bounds = array<i64: 1, 32>}, {pipeline_mode = #tpu.pipeline_mode<synchronous>, transform_indices = @transform_6, window_bounds = array<i64: 1, 32>}, {pipeline_mode = #tpu.pipeline_mode<synchronous>, transform_indices = @transform_7, window_bounds = array<i64: 32, 128>}, {pipeline_mode = #tpu.pipeline_mode<synchronous>, transform_indices = @transform_8, window_bounds = array<i64: 1, 128>}, {pipeline_mode = #tpu.pipeline_mode<synchronous>, transform_indices = @transform_9, window_bounds = array<i64: 128, 32>}, {pipeline_mode = #tpu.pipeline_mode<synchronous>, transform_indices = @transform_10, window_bounds = array<i64: 1, 32>}, {transform_indices = @transform_11, window_bounds = array<i64: 8, 32>}]} {
    %c0 = arith.constant 0 : index
    %c0_0 = arith.constant 0 : index
    %0 = vector.load %arg1[%c0, %c0_0] : memref<8x32xf32, #tpu.memory_space<vmem>>, vector<8x32xf32>
    %cst = arith.constant dense<0.000000e+00> : vector<8xf32>
    %1 = vector.multi_reduction <add>, %0, %cst [1] : vector<8x32xf32> to vector<8xf32>
    %2 = vector.shape_cast %1 : vector<8xf32> to vector<8x1xf32>
    %cst_1 = arith.constant 3.200000e+01 : f32
    %3 = vector.broadcast %cst_1 : f32 to vector<8x1xf32>
    %4 = arith.divf %2, %3 : vector<8x1xf32>
    %5 = vector.broadcast %4 : vector<8x1xf32> to vector<8x32xf32>
    %6 = arith.subf %0, %5 : vector<8x32xf32>
    %7 = arith.mulf %6, %6 : vector<8x32xf32>
    %cst_2 = arith.constant dense<0.000000e+00> : vector<8xf32>
    %8 = vector.multi_reduction <add>, %7, %cst_2 [1] : vector<8x32xf32> to vector<8xf32>
    %9 = vector.shape_cast %8 : vector<8xf32> to vector<8x1xf32>
    %cst_3 = arith.constant 3.200000e+01 : f32
    %10 = vector.broadcast %cst_3 : f32 to vector<8x1xf32>
    %11 = arith.divf %9, %10 : vector<8x1xf32>
    %cst_4 = arith.constant 9.99999974E-6 : f32
    %12 = vector.broadcast %cst_4 : f32 to vector<8x1xf32>
    %13 = arith.addf %11, %12 : vector<8x1xf32>
    %14 = math.rsqrt %13 : vector<8x1xf32>
    %15 = vector.broadcast %14 : vector<8x1xf32> to vector<8x32xf32>
    %16 = arith.mulf %6, %15 : vector<8x32xf32>
    %c0_5 = arith.constant 0 : index
    %c0_6 = arith.constant 0 : index
    %17 = vector.load %arg2[%c0_5, %c0_6] : memref<32x96xf32, #tpu.memory_space<vmem>>, vector<32x96xf32>
    %cst_7 = arith.constant dense<0.000000e+00> : vector<8x96xf32>
    %18 = tpu.matmul %16, %17, %cst_7 {dimension_numbers = #tpu.dot_dimension_numbers<[1], [0], [0], [1], [0, 0, 1, 1], [], []>} : vector<8x32xf32>, vector<32x96xf32>, vector<8x96xf32> -> vector<8x96xf32>
    %c0_8 = arith.constant 0 : index
    %c0_9 = arith.constant 0 : index
    %19 = vector.load %arg3[%c0_8, %c0_9] : memref<1x96xf32, #tpu.memory_space<vmem>>, vector<1x96xf32>
    %20 = vector.shape_cast %19 : vector<1x96xf32> to vector<96xf32>
    %21 = vector.shape_cast %20 : vector<96xf32> to vector<1x96xf32>
    %22 = vector.broadcast %21 : vector<1x96xf32> to vector<8x96xf32>
    %23 = arith.addf %18, %22 : vector<8x96xf32>
    %24 = vector.extract_strided_slice %23 {offsets = [0, 0], sizes = [8, 32], strides = [1, 1]} : vector<8x96xf32> to vector<8x32xf32>
    %25 = vector.extract_strided_slice %23 {offsets = [0, 32], sizes = [8, 32], strides = [1, 1]} : vector<8x96xf32> to vector<8x32xf32>
    %26 = vector.extract_strided_slice %23 {offsets = [0, 64], sizes = [8, 32], strides = [1, 1]} : vector<8x96xf32> to vector<8x32xf32>
    %27 = tpu.iota {dimensions = array<i32: 1>} : vector<1x32xi32>
    %cst_10 = arith.constant 0.000000e+00 : f32
    %28 = vector.broadcast %cst_10 : f32 to vector<8x32xf32>
    %c0_i32 = arith.constant 0 : i32
    %29 = vector.broadcast %c0_i32 : i32 to vector<1x32xi32>
    %30 = arith.cmpi sge, %27, %29 : vector<1x32xi32>
    %c8_i32 = arith.constant 8 : i32
    %31 = vector.broadcast %c8_i32 : i32 to vector<1x32xi32>
    %32 = arith.cmpi slt, %27, %31 : vector<1x32xi32>
    %33 = arith.andi %30, %32 : vector<1x32xi1>
    %34 = arith.extui %33 : vector<1x32xi1> to vector<1x32xi32>
    %35 = arith.sitofp %34 : vector<1x32xi32> to vector<1x32xf32>
    %cst_11 = arith.constant 0.353553385 : f32
    %36 = vector.broadcast %cst_11 : f32 to vector<1x32xf32>
    %37 = arith.mulf %35, %36 : vector<1x32xf32>
    %38 = vector.broadcast %37 : vector<1x32xf32> to vector<8x32xf32>
    %39 = arith.mulf %24, %38 : vector<8x32xf32>
    %cst_12 = arith.constant dense<0.000000e+00> : vector<8x8xf32>
    %40 = tpu.matmul %39, %25, %cst_12 {dimension_numbers = #tpu.dot_dimension_numbers<[1], [1], [0], [0], [0, 0, 1, 0], [], []>} : vector<8x32xf32>, vector<8x32xf32>, vector<8x8xf32> -> vector<8x8xf32>
    %cst_13 = arith.constant dense<0xFF800000> : vector<8xf32>
    %41 = vector.multi_reduction <maximumf>, %40, %cst_13 [1] : vector<8x8xf32> to vector<8xf32>
    %42 = vector.shape_cast %41 : vector<8xf32> to vector<8x1xf32>
    %43 = vector.broadcast %42 : vector<8x1xf32> to vector<8x8xf32>
    %44 = arith.subf %40, %43 : vector<8x8xf32>
    %45 = math.exp %44 : vector<8x8xf32>
    %cst_14 = arith.constant dense<0.000000e+00> : vector<8xf32>
    %46 = vector.multi_reduction <add>, %45, %cst_14 [1] : vector<8x8xf32> to vector<8xf32>
    %47 = vector.shape_cast %46 : vector<8xf32> to vector<8x1xf32>
    %48 = tpu.reciprocal %47 {approx = true} : vector<8x1xf32> -> vector<8x1xf32>
    %49 = vector.broadcast %48 : vector<8x1xf32> to vector<8x8xf32>
    %50 = arith.mulf %45, %49 : vector<8x8xf32>
    %51 = vector.broadcast %35 : vector<1x32xf32> to vector<8x32xf32>
    %52 = arith.mulf %26, %51 : vector<8x32xf32>
    %cst_15 = arith.constant dense<0.000000e+00> : vector<8x32xf32>
    %53 = tpu.matmul %50, %52, %cst_15 {dimension_numbers = #tpu.dot_dimension_numbers<[1], [0], [0], [1], [0, 0, 1, 1], [], []>} : vector<8x8xf32>, vector<8x32xf32>, vector<8x32xf32> -> vector<8x32xf32>
    %54 = arith.addf %28, %53 : vector<8x32xf32>
    %c8_i32_16 = arith.constant 8 : i32
    %55 = vector.broadcast %c8_i32_16 : i32 to vector<1x32xi32>
    %56 = arith.cmpi sge, %27, %55 : vector<1x32xi32>
    %c16_i32 = arith.constant 16 : i32
    %57 = vector.broadcast %c16_i32 : i32 to vector<1x32xi32>
    %58 = arith.cmpi slt, %27, %57 : vector<1x32xi32>
    %59 = arith.andi %56, %58 : vector<1x32xi1>
    %60 = arith.extui %59 : vector<1x32xi1> to vector<1x32xi32>
    %61 = arith.sitofp %60 : vector<1x32xi32> to vector<1x32xf32>
    %cst_17 = arith.constant 0.353553385 : f32
    %62 = vector.broadcast %cst_17 : f32 to vector<1x32xf32>
    %63 = arith.mulf %61, %62 : vector<1x32xf32>
    %64 = vector.broadcast %63 : vector<1x32xf32> to vector<8x32xf32>
    %65 = arith.mulf %24, %64 : vector<8x32xf32>
    %cst_18 = arith.constant dense<0.000000e+00> : vector<8x8xf32>
    %66 = tpu.matmul %65, %25, %cst_18 {dimension_numbers = #tpu.dot_dimension_numbers<[1], [1], [0], [0], [0, 0, 1, 0], [], []>} : vector<8x32xf32>, vector<8x32xf32>, vector<8x8xf32> -> vector<8x8xf32>
    %cst_19 = arith.constant dense<0xFF800000> : vector<8xf32>
    %67 = vector.multi_reduction <maximumf>, %66, %cst_19 [1] : vector<8x8xf32> to vector<8xf32>
    %68 = vector.shape_cast %67 : vector<8xf32> to vector<8x1xf32>
    %69 = vector.broadcast %68 : vector<8x1xf32> to vector<8x8xf32>
    %70 = arith.subf %66, %69 : vector<8x8xf32>
    %71 = math.exp %70 : vector<8x8xf32>
    %cst_20 = arith.constant dense<0.000000e+00> : vector<8xf32>
    %72 = vector.multi_reduction <add>, %71, %cst_20 [1] : vector<8x8xf32> to vector<8xf32>
    %73 = vector.shape_cast %72 : vector<8xf32> to vector<8x1xf32>
    %74 = tpu.reciprocal %73 {approx = true} : vector<8x1xf32> -> vector<8x1xf32>
    %75 = vector.broadcast %74 : vector<8x1xf32> to vector<8x8xf32>
    %76 = arith.mulf %71, %75 : vector<8x8xf32>
    %77 = vector.broadcast %61 : vector<1x32xf32> to vector<8x32xf32>
    %78 = arith.mulf %26, %77 : vector<8x32xf32>
    %cst_21 = arith.constant dense<0.000000e+00> : vector<8x32xf32>
    %79 = tpu.matmul %76, %78, %cst_21 {dimension_numbers = #tpu.dot_dimension_numbers<[1], [0], [0], [1], [0, 0, 1, 1], [], []>} : vector<8x8xf32>, vector<8x32xf32>, vector<8x32xf32> -> vector<8x32xf32>
    %80 = arith.addf %54, %79 : vector<8x32xf32>
    %c16_i32_22 = arith.constant 16 : i32
    %81 = vector.broadcast %c16_i32_22 : i32 to vector<1x32xi32>
    %82 = arith.cmpi sge, %27, %81 : vector<1x32xi32>
    %c24_i32 = arith.constant 24 : i32
    %83 = vector.broadcast %c24_i32 : i32 to vector<1x32xi32>
    %84 = arith.cmpi slt, %27, %83 : vector<1x32xi32>
    %85 = arith.andi %82, %84 : vector<1x32xi1>
    %86 = arith.extui %85 : vector<1x32xi1> to vector<1x32xi32>
    %87 = arith.sitofp %86 : vector<1x32xi32> to vector<1x32xf32>
    %cst_23 = arith.constant 0.353553385 : f32
    %88 = vector.broadcast %cst_23 : f32 to vector<1x32xf32>
    %89 = arith.mulf %87, %88 : vector<1x32xf32>
    %90 = vector.broadcast %89 : vector<1x32xf32> to vector<8x32xf32>
    %91 = arith.mulf %24, %90 : vector<8x32xf32>
    %cst_24 = arith.constant dense<0.000000e+00> : vector<8x8xf32>
    %92 = tpu.matmul %91, %25, %cst_24 {dimension_numbers = #tpu.dot_dimension_numbers<[1], [1], [0], [0], [0, 0, 1, 0], [], []>} : vector<8x32xf32>, vector<8x32xf32>, vector<8x8xf32> -> vector<8x8xf32>
    %cst_25 = arith.constant dense<0xFF800000> : vector<8xf32>
    %93 = vector.multi_reduction <maximumf>, %92, %cst_25 [1] : vector<8x8xf32> to vector<8xf32>
    %94 = vector.shape_cast %93 : vector<8xf32> to vector<8x1xf32>
    %95 = vector.broadcast %94 : vector<8x1xf32> to vector<8x8xf32>
    %96 = arith.subf %92, %95 : vector<8x8xf32>
    %97 = math.exp %96 : vector<8x8xf32>
    %cst_26 = arith.constant dense<0.000000e+00> : vector<8xf32>
    %98 = vector.multi_reduction <add>, %97, %cst_26 [1] : vector<8x8xf32> to vector<8xf32>
    %99 = vector.shape_cast %98 : vector<8xf32> to vector<8x1xf32>
    %100 = tpu.reciprocal %99 {approx = true} : vector<8x1xf32> -> vector<8x1xf32>
    %101 = vector.broadcast %100 : vector<8x1xf32> to vector<8x8xf32>
    %102 = arith.mulf %97, %101 : vector<8x8xf32>
    %103 = vector.broadcast %87 : vector<1x32xf32> to vector<8x32xf32>
    %104 = arith.mulf %26, %103 : vector<8x32xf32>
    %cst_27 = arith.constant dense<0.000000e+00> : vector<8x32xf32>
    %105 = tpu.matmul %102, %104, %cst_27 {dimension_numbers = #tpu.dot_dimension_numbers<[1], [0], [0], [1], [0, 0, 1, 1], [], []>} : vector<8x8xf32>, vector<8x32xf32>, vector<8x32xf32> -> vector<8x32xf32>
    %106 = arith.addf %80, %105 : vector<8x32xf32>
    %c24_i32_28 = arith.constant 24 : i32
    %107 = vector.broadcast %c24_i32_28 : i32 to vector<1x32xi32>
    %108 = arith.cmpi sge, %27, %107 : vector<1x32xi32>
    %c32_i32 = arith.constant 32 : i32
    %109 = vector.broadcast %c32_i32 : i32 to vector<1x32xi32>
    %110 = arith.cmpi slt, %27, %109 : vector<1x32xi32>
    %111 = arith.andi %108, %110 : vector<1x32xi1>
    %112 = arith.extui %111 : vector<1x32xi1> to vector<1x32xi32>
    %113 = arith.sitofp %112 : vector<1x32xi32> to vector<1x32xf32>
    %cst_29 = arith.constant 0.353553385 : f32
    %114 = vector.broadcast %cst_29 : f32 to vector<1x32xf32>
    %115 = arith.mulf %113, %114 : vector<1x32xf32>
    %116 = vector.broadcast %115 : vector<1x32xf32> to vector<8x32xf32>
    %117 = arith.mulf %24, %116 : vector<8x32xf32>
    %cst_30 = arith.constant dense<0.000000e+00> : vector<8x8xf32>
    %118 = tpu.matmul %117, %25, %cst_30 {dimension_numbers = #tpu.dot_dimension_numbers<[1], [1], [0], [0], [0, 0, 1, 0], [], []>} : vector<8x32xf32>, vector<8x32xf32>, vector<8x8xf32> -> vector<8x8xf32>
    %cst_31 = arith.constant dense<0xFF800000> : vector<8xf32>
    %119 = vector.multi_reduction <maximumf>, %118, %cst_31 [1] : vector<8x8xf32> to vector<8xf32>
    %120 = vector.shape_cast %119 : vector<8xf32> to vector<8x1xf32>
    %121 = vector.broadcast %120 : vector<8x1xf32> to vector<8x8xf32>
    %122 = arith.subf %118, %121 : vector<8x8xf32>
    %123 = math.exp %122 : vector<8x8xf32>
    %cst_32 = arith.constant dense<0.000000e+00> : vector<8xf32>
    %124 = vector.multi_reduction <add>, %123, %cst_32 [1] : vector<8x8xf32> to vector<8xf32>
    %125 = vector.shape_cast %124 : vector<8xf32> to vector<8x1xf32>
    %126 = tpu.reciprocal %125 {approx = true} : vector<8x1xf32> -> vector<8x1xf32>
    %127 = vector.broadcast %126 : vector<8x1xf32> to vector<8x8xf32>
    %128 = arith.mulf %123, %127 : vector<8x8xf32>
    %129 = vector.broadcast %113 : vector<1x32xf32> to vector<8x32xf32>
    %130 = arith.mulf %26, %129 : vector<8x32xf32>
    %cst_33 = arith.constant dense<0.000000e+00> : vector<8x32xf32>
    %131 = tpu.matmul %128, %130, %cst_33 {dimension_numbers = #tpu.dot_dimension_numbers<[1], [0], [0], [1], [0, 0, 1, 1], [], []>} : vector<8x8xf32>, vector<8x32xf32>, vector<8x32xf32> -> vector<8x32xf32>
    %132 = arith.addf %106, %131 : vector<8x32xf32>
    %c0_34 = arith.constant 0 : index
    %c0_35 = arith.constant 0 : index
    %133 = vector.load %arg4[%c0_34, %c0_35] : memref<32x32xf32, #tpu.memory_space<vmem>>, vector<32x32xf32>
    %cst_36 = arith.constant dense<0.000000e+00> : vector<8x32xf32>
    %134 = tpu.matmul %132, %133, %cst_36 {dimension_numbers = #tpu.dot_dimension_numbers<[1], [0], [0], [1], [0, 0, 1, 1], [], []>} : vector<8x32xf32>, vector<32x32xf32>, vector<8x32xf32> -> vector<8x32xf32>
    %c0_37 = arith.constant 0 : index
    %c0_38 = arith.constant 0 : index
    %135 = vector.load %arg5[%c0_37, %c0_38] : memref<1x32xf32, #tpu.memory_space<vmem>>, vector<1x32xf32>
    %136 = vector.shape_cast %135 : vector<1x32xf32> to vector<32xf32>
    %137 = vector.shape_cast %136 : vector<32xf32> to vector<1x32xf32>
    %138 = vector.broadcast %137 : vector<1x32xf32> to vector<8x32xf32>
    %139 = arith.addf %134, %138 : vector<8x32xf32>
    %140 = arith.addf %139, %0 : vector<8x32xf32>
    %c0_39 = arith.constant 0 : index
    %c0_40 = arith.constant 0 : index
    %141 = vector.load %arg6[%c0_39, %c0_40] : memref<1x32xf32, #tpu.memory_space<vmem>>, vector<1x32xf32>
    %142 = vector.shape_cast %141 : vector<1x32xf32> to vector<32xf32>
    %c0_41 = arith.constant 0 : index
    %c0_42 = arith.constant 0 : index
    %143 = vector.load %arg7[%c0_41, %c0_42] : memref<1x32xf32, #tpu.memory_space<vmem>>, vector<1x32xf32>
    %144 = vector.shape_cast %143 : vector<1x32xf32> to vector<32xf32>
    %cst_43 = arith.constant dense<0.000000e+00> : vector<8xf32>
    %145 = vector.multi_reduction <add>, %140, %cst_43 [1] : vector<8x32xf32> to vector<8xf32>
    %146 = vector.shape_cast %145 : vector<8xf32> to vector<8x1xf32>
    %cst_44 = arith.constant 3.200000e+01 : f32
    %147 = vector.broadcast %cst_44 : f32 to vector<8x1xf32>
    %148 = arith.divf %146, %147 : vector<8x1xf32>
    %149 = vector.broadcast %148 : vector<8x1xf32> to vector<8x32xf32>
    %150 = arith.subf %140, %149 : vector<8x32xf32>
    %151 = arith.mulf %150, %150 : vector<8x32xf32>
    %cst_45 = arith.constant dense<0.000000e+00> : vector<8xf32>
    %152 = vector.multi_reduction <add>, %151, %cst_45 [1] : vector<8x32xf32> to vector<8xf32>
    %153 = vector.shape_cast %152 : vector<8xf32> to vector<8x1xf32>
    %cst_46 = arith.constant 3.200000e+01 : f32
    %154 = vector.broadcast %cst_46 : f32 to vector<8x1xf32>
    %155 = arith.divf %153, %154 : vector<8x1xf32>
    %cst_47 = arith.constant 9.99999974E-6 : f32
    %156 = vector.broadcast %cst_47 : f32 to vector<8x1xf32>
    %157 = arith.addf %155, %156 : vector<8x1xf32>
    %158 = math.rsqrt %157 : vector<8x1xf32>
    %159 = vector.broadcast %158 : vector<8x1xf32> to vector<8x32xf32>
    %160 = arith.mulf %150, %159 : vector<8x32xf32>
    %161 = vector.shape_cast %142 : vector<32xf32> to vector<1x32xf32>
    %162 = vector.broadcast %161 : vector<1x32xf32> to vector<8x32xf32>
    %163 = arith.mulf %160, %162 : vector<8x32xf32>
    %164 = vector.shape_cast %144 : vector<32xf32> to vector<1x32xf32>
    %165 = vector.broadcast %164 : vector<1x32xf32> to vector<8x32xf32>
    %166 = arith.addf %163, %165 : vector<8x32xf32>
    %c0_48 = arith.constant 0 : index
    %c0_49 = arith.constant 0 : index
    %167 = vector.load %arg8[%c0_48, %c0_49] : memref<32x128xf32, #tpu.memory_space<vmem>>, vector<32x128xf32>
    %cst_50 = arith.constant dense<0.000000e+00> : vector<8x128xf32>
    %168 = tpu.matmul %166, %167, %cst_50 {dimension_numbers = #tpu.dot_dimension_numbers<[1], [0], [0], [1], [0, 0, 1, 1], [], []>} : vector<8x32xf32>, vector<32x128xf32>, vector<8x128xf32> -> vector<8x128xf32>
    %c0_51 = arith.constant 0 : index
    %c0_52 = arith.constant 0 : index
    %169 = vector.load %arg9[%c0_51, %c0_52] : memref<1x128xf32, #tpu.memory_space<vmem>>, vector<1x128xf32>
    %170 = vector.shape_cast %169 : vector<1x128xf32> to vector<128xf32>
    %171 = vector.shape_cast %170 : vector<128xf32> to vector<1x128xf32>
    %172 = vector.broadcast %171 : vector<1x128xf32> to vector<8x128xf32>
    %173 = arith.addf %168, %172 : vector<8x128xf32>
    %cst_53 = arith.constant 5.000000e-01 : f32
    %174 = vector.broadcast %cst_53 : f32 to vector<8x128xf32>
    %175 = arith.mulf %174, %173 : vector<8x128xf32>
    %cst_54 = arith.constant 1.41421354 : f32
    %176 = vector.broadcast %cst_54 : f32 to vector<8x128xf32>
    %177 = arith.divf %173, %176 : vector<8x128xf32>
    %178 = math.erf %177 : vector<8x128xf32>
    %cst_55 = arith.constant 1.000000e+00 : f32
    %179 = vector.broadcast %cst_55 : f32 to vector<8x128xf32>
    %180 = arith.addf %179, %178 : vector<8x128xf32>
    %181 = arith.mulf %175, %180 : vector<8x128xf32>
    %c0_56 = arith.constant 0 : index
    %c0_57 = arith.constant 0 : index
    %182 = vector.load %arg10[%c0_56, %c0_57] : memref<128x32xf32, #tpu.memory_space<vmem>>, vector<128x32xf32>
    %cst_58 = arith.constant dense<0.000000e+00> : vector<8x32xf32>
    %183 = tpu.matmul %181, %182, %cst_58 {dimension_numbers = #tpu.dot_dimension_numbers<[1], [0], [0], [1], [0, 0, 1, 1], [], []>} : vector<8x128xf32>, vector<128x32xf32>, vector<8x32xf32> -> vector<8x32xf32>
    %c0_59 = arith.constant 0 : index
    %c0_60 = arith.constant 0 : index
    %184 = vector.load %arg11[%c0_59, %c0_60] : memref<1x32xf32, #tpu.memory_space<vmem>>, vector<1x32xf32>
    %185 = vector.shape_cast %184 : vector<1x32xf32> to vector<32xf32>
    %186 = vector.shape_cast %185 : vector<32xf32> to vector<1x32xf32>
    %187 = vector.broadcast %186 : vector<1x32xf32> to vector<8x32xf32>
    %188 = arith.addf %183, %187 : vector<8x32xf32>
    %189 = arith.addf %188, %166 : vector<8x32xf32>
    %c0_61 = arith.constant 0 : index
    %c0_62 = arith.constant 0 : index
    %190 = vector.load %arg12[%c0_61, %c0_62] : memref<8x32xf32, #tpu.memory_space<vmem>>, vector<8x32xf32>
    tpu.vector_store %arg12[%c0_61, %c0_62], %189 {strides = array<i32>} : memref<8x32xf32, #tpu.memory_space<vmem>>, vector<8x32xf32>,
    return
  }
  func.func @transform_0(%arg0: i32) -> (i32, i32) {
    %c0_i32 = arith.constant 0 : i32
    %c0_i32_0 = arith.constant 0 : i32
    return %arg0, %c0_i32 : i32, i32
  }
  func.func @transform_1(%arg0: i32) -> (i32, i32) {
    %c0_i32 = arith.constant 0 : i32
    %c0_i32_0 = arith.constant 0 : i32
    %c0_i32_1 = arith.constant 0 : i32
    return %c0_i32, %c0_i32_0 : i32, i32
  }
  func.func @transform_2(%arg0: i32) -> (i32, i32) {
    %c0_i32 = arith.constant 0 : i32
    %c0_i32_0 = arith.constant 0 : i32
    %c0_i32_1 = arith.constant 0 : i32
    return %c0_i32, %c0_i32_0 : i32, i32
  }
  func.func @transform_3(%arg0: i32) -> (i32, i32) {
    %c0_i32 = arith.constant 0 : i32
    %c0_i32_0 = arith.constant 0 : i32
    %c0_i32_1 = arith.constant 0 : i32
    return %c0_i32, %c0_i32_0 : i32, i32
  }
  func.func @transform_4(%arg0: i32) -> (i32, i32) {
    %c0_i32 = arith.constant 0 : i32
    %c0_i32_0 = arith.constant 0 : i32
    %c0_i32_1 = arith.constant 0 : i32
    return %c0_i32, %c0_i32_0 : i32, i32
  }
  func.func @transform_5(%arg0: i32) -> (i32, i32) {
    %c0_i32 = arith.constant 0 : i32
    %c0_i32_0 = arith.constant 0 : i32
    %c0_i32_1 = arith.constant 0 : i32
    return %c0_i32, %c0_i32_0 : i32, i32
  }
  func.func @transform_6(%arg0: i32) -> (i32, i32) {
    %c0_i32 = arith.constant 0 : i32
    %c0_i32_0 = arith.constant 0 : i32
    %c0_i32_1 = arith.constant 0 : i32
    return %c0_i32, %c0_i32_0 : i32, i32
  }
  func.func @transform_7(%arg0: i32) -> (i32, i32) {
    %c0_i32 = arith.constant 0 : i32
    %c0_i32_0 = arith.constant 0 : i32
    %c0_i32_1 = arith.constant 0 : i32
    return %c0_i32, %c0_i32_0 : i32, i32
  }
  func.func @transform_8(%arg0: i32) -> (i32, i32) {
    %c0_i32 = arith.constant 0 : i32
    %c0_i32_0 = arith.constant 0 : i32
    %c0_i32_1 = arith.constant 0 : i32
    return %c0_i32, %c0_i32_0 : i32, i32
  }
  func.func @transform_9(%arg0: i32) -> (i32, i32) {
    %c0_i32 = arith.constant 0 : i32
    %c0_i32_0 = arith.constant 0 : i32
    %c0_i32_1 = arith.constant 0 : i32
    return %c0_i32, %c0_i32_0 : i32, i32
  }
  func.func @transform_10(%arg0: i32) -> (i32, i32) {
    %c0_i32 = arith.constant 0 : i32
    %c0_i32_0 = arith.constant 0 : i32
    %c0_i32_1 = arith.constant 0 : i32
    return %c0_i32, %c0_i32_0 : i32, i32
  }
  func.func @transform_11(%arg0: i32) -> (i32, i32) {
    %c0_i32 = arith.constant 0 : i32
    %c0_i32_0 = arith.constant 0 : i32
    return %arg0, %c0_i32 : i32, i32
  }
}

</mosaic_0001>

<llo_original>
// kernel: tpu_custom_call.1
$region0: #{tpu_custom_call.1}
  #allocation0 [shape = 'u32[]', space=smem, size = 0x4, offset = 0x4, fixed_abs, tag = 'smem constant byte address 0x4 - core index']
  #allocation1 [shape = 'u32[144,128]{1,0:T(1,128)}', space=vmem, size = 0x12000, scoped, tag = 'internal scratch']
  %s0 = inlined_call_operand.vmem [shape: f32[16,32], index: 0, kind: input, shape index: {}]
  %s1 = inlined_call_operand.vmem [shape: f32[32,96], index: 1, kind: input, shape index: {}]
  %s2 = inlined_call_operand.vmem [shape: f32[1,96], index: 2, kind: input, shape index: {}]
  %s3 = inlined_call_operand.vmem [shape: f32[32,32], index: 3, kind: input, shape index: {}]
  %s4 = inlined_call_operand.vmem [shape: f32[1,32], index: 4, kind: input, shape index: {}]
  %s5 = inlined_call_operand.vmem [shape: f32[1,32], index: 5, kind: input, shape index: {}]
  %s6 = inlined_call_operand.vmem [shape: f32[1,32], index: 6, kind: input, shape index: {}]
  %s7 = inlined_call_operand.vmem [shape: f32[32,128], index: 7, kind: input, shape index: {}]
  %s8 = inlined_call_operand.vmem [shape: f32[1,128], index: 8, kind: input, shape index: {}]
  %s9 = inlined_call_operand.vmem [shape: f32[128,32], index: 9, kind: input, shape index: {}]
  %s10 = inlined_call_operand.vmem [shape: f32[1,32], index: 10, kind: input, shape index: {}]
  %s11 = inlined_call_operand.hbm [shape: f32[16,32], index: 11, kind: output, shape index: {}]
  %s12 = sld [smem:[#allocation0]]
  $region77: #{tpu_custom_call.1} parent=0
    _
  %s14 = ssub.s32 1, %s12
  %s15 = scalar_select 0, %s14, %s12
  $region1: #{tpu_custom_call.1} parent=0
    #allocation2 [shape = 'u8[8192]{0}', space=vmem, size = 0x2000, scoped, tag = 'output window, operand 0']
    #allocation3 [shape = 's32[2]{0}', space=sflag, size = 0x8, scoped, tag = 'scoped memory for tpu_custom_call.1']
    %16 = vsyncpa [#allocation3], 0
    %s17 = scalar_lea.sflag [#allocation3], 1
    %18 = vsyncpa %s17, 0
    loop: start=0, step=1, limit=4
    $region2: #{tpu_custom_call.1} parent=1 // loop_pre_header
      _
    $region3: #{tpu_custom_call.1} parent=1 // loop_header
      %s20 = sphi 0, %s24
      %p21 = scmp.ge.s32.totalorder %s20, 4
      %s30 = sphi 0, %s32
      %s33 = sphi 0, %s30
      %s34 = sphi 0, %s33
      %s50 = sphi 0, %s34
      %s54 = sphi 0, %s54
      %s56 = sphi 0, %s54
      %s57 = sphi 0, %s56
      %s71 = sphi 0, %s57
      %s75 = sphi 0, %s75
      %s77 = sphi 0, %s75
      %s78 = sphi 0, %s77
      %s92 = sphi 0, %s78
      %s96 = sphi 0, %s96
      %s98 = sphi 0, %s96
      %s99 = sphi 0, %s98
      %s113 = sphi 0, %s99
      %s117 = sphi 0, %s117
      %s119 = sphi 0, %s117
      %s120 = sphi 0, %s119
      %s134 = sphi 0, %s120
      %s138 = sphi 0, %s138
      %s140 = sphi 0, %s138
      %s141 = sphi 0, %s140
      %s155 = sphi 0, %s141
      %s159 = sphi 0, %s159
      %s161 = sphi 0, %s159
      %s162 = sphi 0, %s161
      %s176 = sphi 0, %s162
      %s180 = sphi 0, %s180
      %s182 = sphi 0, %s180
      %s183 = sphi 0, %s182
      %s197 = sphi 0, %s183
      %s201 = sphi 0, %s201
      %s203 = sphi 0, %s201
      %s204 = sphi 0, %s203
      %s218 = sphi 0, %s204
      %s222 = sphi 0, %s222
      %s224 = sphi 0, %s222
      %s225 = sphi 0, %s224
      %s239 = sphi 0, %s225
      %s243 = sphi 0, %s243
      %s245 = sphi 0, %s243
      %s246 = sphi 0, %s245
      %s260 = sphi 0, %s246
      %s266 = sphi 0, %s268
      %s269 = sphi 0, %s266
      %s270 = sphi 0, %s269
      %s286 = sphi 0, %s270
    $region4: #{tpu_custom_call.1} parent=1 // loop_header_branch
      %23 = sbr.rel (%p21) target = $region8
    $region5: #{tpu_custom_call.1} parent=1 // loop_body
      %s25 = ssub.s32 %s20, 1
      %s26 = ssub.s32 %s20, 2
      %s27 = sadd.s32 %s20, 1
      %s28 = ssub.s32 %s20, %s27
      %p29 = scmp.eq.s32.totalorder %s28, 0
      %s31 = sadd.s32 %s30, 1
      %s32 = scalar_select %p29, %s30, %s31
      %p35 = pneg %p29
      %p36 = scmp.eq.s32.totalorder %s20, 1
      %p37 = por %p35, %p36
      %p38 = scmp.ne.s32.totalorder %s30, %s33
      %p39 = scmp.eq.s32.totalorder %s20, 0
      %p40 = por %p38, %p39
      %p41 = scmp.ne.s32.totalorder %s30, %s33
      %p42 = scmp.eq.s32.totalorder %s25, 1
      %p43 = por %p41, %p42
      %p44 = scmp.ne.s32.totalorder %s33, %s34
      %p45 = scmp.eq.s32.totalorder %s25, 0
      %p46 = por %p44, %p45
      %p47 = scmp.ne.s32.totalorder %s33, %s34
      %p48 = scmp.eq.s32.totalorder %s26, 1
      %p49 = por %p47, %p48
      %p51 = scmp.ne.s32.totalorder %s34, %s50
      %p52 = scmp.eq.s32.totalorder %s26, 0
      %p53 = por %p51, %p52
      %s55 = sadd.s32 %s54, 1
      %p58 = scmp.eq.s32.totalorder %s20, 1
      %p59 = scmp.ne.s32.totalorder %s54, %s56
      %p60 = scmp.eq.s32.totalorder %s20, 0
      %p61 = por %p59, %p60
      %p62 = scmp.ne.s32.totalorder %s54, %s56
      %p63 = scmp.eq.s32.totalorder %s25, 1
      %p64 = por %p62, %p63
      %p65 = scmp.ne.s32.totalorder %s56, %s57
      %p66 = scmp.eq.s32.totalorder %s25, 0
      %p67 = por %p65, %p66
      %p68 = scmp.ne.s32.totalorder %s56, %s57
      %p69 = scmp.eq.s32.totalorder %s26, 1
      %p70 = por %p68, %p69
      %p72 = scmp.ne.s32.totalorder %s57, %s71
      %p73 = scmp.eq.s32.totalorder %s26, 0
      %p74 = por %p72, %p73
      %s76 = sadd.s32 %s75, 1
      %p79 = scmp.eq.s32.totalorder %s20, 1
      %p80 = scmp.ne.s32.totalorder %s75, %s77
      %p81 = scmp.eq.s32.totalorder %s20, 0
      %p82 = por %p80, %p81
      %p83 = scmp.ne.s32.totalorder %s75, %s77
      %p84 = scmp.eq.s32.totalorder %s25, 1
      %p85 = por %p83, %p84
      %p86 = scmp.ne.s32.totalorder %s77, %s78
      %p87 = scmp.eq.s32.totalorder %s25, 0
      %p88 = por %p86, %p87
      %p89 = scmp.ne.s32.totalorder %s77, %s78
      %p90 = scmp.eq.s32.totalorder %s26, 1
      %p91 = por %p89, %p90
      %p93 = scmp.ne.s32.totalorder %s78, %s92
      %p94 = scmp.eq.s32.totalorder %s26, 0
      %p95 = por %p93, %p94
      %s97 = sadd.s32 %s96, 1
      %p100 = scmp.eq.s32.totalorder %s20, 1
      %p101 = scmp.ne.s32.totalorder %s96, %s98
      %p102 = scmp.eq.s32.totalorder %s20, 0
      %p103 = por %p101, %p102
      %p104 = scmp.ne.s32.totalorder %s96, %s98
      %p105 = scmp.eq.s32.totalorder %s25, 1
      %p106 = por %p104, %p105
      %p107 = scmp.ne.s32.totalorder %s98, %s99
      %p108 = scmp.eq.s32.totalorder %s25, 0
      %p109 = por %p107, %p108
      %p110 = scmp.ne.s32.totalorder %s98, %s99
      %p111 = scmp.eq.s32.totalorder %s26, 1
      %p112 = por %p110, %p111
      %p114 = scmp.ne.s32.totalorder %s99, %s113
      %p115 = scmp.eq.s32.totalorder %s26, 0
      %p116 = por %p114, %p115
      %s118 = sadd.s32 %s117, 1
      %p121 = scmp.eq.s32.totalorder %s20, 1
      %p122 = scmp.ne.s32.totalorder %s117, %s119
      %p123 = scmp.eq.s32.totalorder %s20, 0
      %p124 = por %p122, %p123
      %p125 = scmp.ne.s32.totalorder %s117, %s119
      %p126 = scmp.eq.s32.totalorder %s25, 1
      %p127 = por %p125, %p126
      %p128 = scmp.ne.s32.totalorder %s119, %s120
      %p129 = scmp.eq.s32.totalorder %s25, 0
      %p130 = por %p128, %p129
      %p131 = scmp.ne.s32.totalorder %s119, %s120
      %p132 = scmp.eq.s32.totalorder %s26, 1
      %p133 = por %p131, %p132
      %p135 = scmp.ne.s32.totalorder %s120, %s134
      %p136 = scmp.eq.s32.totalorder %s26, 0
      %p137 = por %p135, %p136
      %s139 = sadd.s32 %s138, 1
      %p142 = scmp.eq.s32.totalorder %s20, 1
      %p143 = scmp.ne.s32.totalorder %s138, %s140
      %p144 = scmp.eq.s32.totalorder %s20, 0
      %p145 = por %p143, %p144
      %p146 = scmp.ne.s32.totalorder %s138, %s140
      %p147 = scmp.eq.s32.totalorder %s25, 1
      %p148 = por %p146, %p147
      %p149 = scmp.ne.s32.totalorder %s140, %s141
      %p150 = scmp.eq.s32.totalorder %s25, 0
      %p151 = por %p149, %p150
      %p152 = scmp.ne.s32.totalorder %s140, %s141
      %p153 = scmp.eq.s32.totalorder %s26, 1
      %p154 = por %p152, %p153
      %p156 = scmp.ne.s32.totalorder %s141, %s155
      %p157 = scmp.eq.s32.totalorder %s26, 0
      %p158 = por %p156, %p157
      %s160 = sadd.s32 %s159, 1
      %p163 = scmp.eq.s32.totalorder %s20, 1
      %p164 = scmp.ne.s32.totalorder %s159, %s161
      %p165 = scmp.eq.s32.totalorder %s20, 0
      %p166 = por %p164, %p165
      %p167 = scmp.ne.s32.totalorder %s159, %s161
      %p168 = scmp.eq.s32.totalorder %s25, 1
      %p169 = por %p167, %p168
      %p170 = scmp.ne.s32.totalorder %s161, %s162
      %p171 = scmp.eq.s32.totalorder %s25, 0
      %p172 = por %p170, %p171
      %p173 = scmp.ne.s32.totalorder %s161, %s162
      %p174 = scmp.eq.s32.totalorder %s26, 1
      %p175 = por %p173, %p174
      %p177 = scmp.ne.s32.totalorder %s162, %s176
      %p178 = scmp.eq.s32.totalorder %s26, 0
      %p179 = por %p177, %p178
      %s181 = sadd.s32 %s180, 1
      %p184 = scmp.eq.s32.totalorder %s20, 1
      %p185 = scmp.ne.s32.totalorder %s180, %s182
      %p186 = scmp.eq.s32.totalorder %s20, 0
      %p187 = por %p185, %p186
      %p188 = scmp.ne.s32.totalorder %s180, %s182
      %p189 = scmp.eq.s32.totalorder %s25, 1
      %p190 = por %p188, %p189
      %p191 = scmp.ne.s32.totalorder %s182, %s183
      %p192 = scmp.eq.s32.totalorder %s25, 0
      %p193 = por %p191, %p192
      %p194 = scmp.ne.s32.totalorder %s182, %s183
      %p195 = scmp.eq.s32.totalorder %s26, 1
      %p196 = por %p194, %p195
      %p198 = scmp.ne.s32.totalorder %s183, %s197
      %p199 = scmp.eq.s32.totalorder %s26, 0
      %p200 = por %p198, %p199
      %s202 = sadd.s32 %s201, 1
      %p205 = scmp.eq.s32.totalorder %s20, 1
      %p206 = scmp.ne.s32.totalorder %s201, %s203
      %p207 = scmp.eq.s32.totalorder %s20, 0
      %p208 = por %p206, %p207
      %p209 = scmp.ne.s32.totalorder %s201, %s203
      %p210 = scmp.eq.s32.totalorder %s25, 1
      %p211 = por %p209, %p210
      %p212 = scmp.ne.s32.totalorder %s203, %s204
      %p213 = scmp.eq.s32.totalorder %s25, 0
      %p214 = por %p212, %p213
      %p215 = scmp.ne.s32.totalorder %s203, %s204
      %p216 = scmp.eq.s32.totalorder %s26, 1
      %p217 = por %p215, %p216
      %p219 = scmp.ne.s32.totalorder %s204, %s218
      %p220 = scmp.eq.s32.totalorder %s26, 0
      %p221 = por %p219, %p220
      %s223 = sadd.s32 %s222, 1
      %p226 = scmp.eq.s32.totalorder %s20, 1
      %p227 = scmp.ne.s32.totalorder %s222, %s224
      %p228 = scmp.eq.s32.totalorder %s20, 0
      %p229 = por %p227, %p228
      %p230 = scmp.ne.s32.totalorder %s222, %s224
      %p231 = scmp.eq.s32.totalorder %s25, 1
      %p232 = por %p230, %p231
      %p233 = scmp.ne.s32.totalorder %s224, %s225
      %p234 = scmp.eq.s32.totalorder %s25, 0
      %p235 = por %p233, %p234
      %p236 = scmp.ne.s32.totalorder %s224, %s225
      %p237 = scmp.eq.s32.totalorder %s26, 1
      %p238 = por %p236, %p237
      %p240 = scmp.ne.s32.totalorder %s225, %s239
      %p241 = scmp.eq.s32.totalorder %s26, 0
      %p242 = por %p240, %p241
      %s244 = sadd.s32 %s243, 1
      %p247 = scmp.eq.s32.totalorder %s20, 1
      %p248 = scmp.ne.s32.totalorder %s243, %s245
      %p249 = scmp.eq.s32.totalorder %s20, 0
      %p250 = por %p248, %p249
      %p251 = scmp.ne.s32.totalorder %s243, %s245
      %p252 = scmp.eq.s32.totalorder %s25, 1
      %p253 = por %p251, %p252
      %p254 = scmp.ne.s32.totalorder %s245, %s246
      %p255 = scmp.eq.s32.totalorder %s25, 0
      %p256 = por %p254, %p255
      %p257 = scmp.ne.s32.totalorder %s245, %s246
      %p258 = scmp.eq.s32.totalorder %s26, 1
      %p259 = por %p257, %p258
      %p261 = scmp.ne.s32.totalorder %s246, %s260
      %p262 = scmp.eq.s32.totalorder %s26, 0
      %p263 = por %p261, %p262
      %s264 = ssub.s32 %s20, %s27
      %p265 = scmp.eq.s32.totalorder %s264, 0
      %s267 = sadd.s32 %s266, 1
      %s268 = scalar_select %p265, %s266, %s267
      %p271 = pneg %p265
      %p272 = scmp.eq.s32.totalorder %s20, 1
      %p273 = por %p271, %p272
      %p274 = scmp.ne.s32.totalorder %s266, %s269
      %p275 = scmp.eq.s32.totalorder %s20, 0
      %p276 = por %p274, %p275
      %p277 = scmp.ne.s32.totalorder %s266, %s269
      %p278 = scmp.eq.s32.totalorder %s25, 1
      %p279 = por %p277, %p278
      %p280 = scmp.ne.s32.totalorder %s269, %s270
      %p281 = scmp.eq.s32.totalorder %s25, 0
      %p282 = por %p280, %p281
      %p283 = scmp.ne.s32.totalorder %s269, %s270
      %p284 = scmp.eq.s32.totalorder %s26, 1
      %p285 = por %p283, %p284
      %p287 = scmp.ne.s32.totalorder %s270, %s286
      %p288 = scmp.eq.s32.totalorder %s26, 0
      %p289 = por %p287, %p288
      %p290 = scmp.le.s32.totalorder 1, %s20
      %p291 = scmp.lt.s32.totalorder %s20, 3
      %p292 = pnand %p290, %p291
      %p293 = pneg %p292
      // Predicated region
      $region9: #{tpu_custom_call.1} parent=5 // pred_check
        _
      $region10: #{tpu_custom_call.1} parent=5 // pred_check_branch
        %295 = sbr.rel (%p292) target = $region12
      $region11: #{tpu_custom_call.1} parent=5 // pred_region
        %s296 = ssub.s32 %s20, 1
        // Predicated region
        $region13: #{tpu_custom_call.1} parent=11 // pred_check
          %p297 = pneg %p67
        $region14: #{tpu_custom_call.1} parent=11 // pred_check_branch
          %299 = sbr.rel (%p297) target = $region16
        $region15: #{tpu_custom_call.1} parent=11 // pred_region
          _
        $region16: #{tpu_custom_call.1} parent=11 // pred_fallthru
          _
        // Predicated region
        $region17: #{tpu_custom_call.1} parent=11 // pred_check
          %p300 = pneg %p88
        $region18: #{tpu_custom_call.1} parent=11 // pred_check_branch
          %302 = sbr.rel (%p300) target = $region20
        $region19: #{tpu_custom_call.1} parent=11 // pred_region
          _
        $region20: #{tpu_custom_call.1} parent=11 // pred_fallthru
          _
        // Predicated region
        $region21: #{tpu_custom_call.1} parent=11 // pred_check
          %p303 = pneg %p109
        $region22: #{tpu_custom_call.1} parent=11 // pred_check_branch
          %305 = sbr.rel (%p303) target = $region24
        $region23: #{tpu_custom_call.1} parent=11 // pred_region
          _
        $region24: #{tpu_custom_call.1} parent=11 // pred_fallthru
          _
        // Predicated region
        $region25: #{tpu_custom_call.1} parent=11 // pred_check
          %p306 = pneg %p130
        $region26: #{tpu_custom_call.1} parent=11 // pred_check_branch
          %308 = sbr.rel (%p306) target = $region28
        $region27: #{tpu_custom_call.1} parent=11 // pred_region
          _
        $region28: #{tpu_custom_call.1} parent=11 // pred_fallthru
          _
        // Predicated region
        $region29: #{tpu_custom_call.1} parent=11 // pred_check
          %p309 = pneg %p151
        $region30: #{tpu_custom_call.1} parent=11 // pred_check_branch
          %311 = sbr.rel (%p309) target = $region32
        $region31: #{tpu_custom_call.1} parent=11 // pred_region
          _
        $region32: #{tpu_custom_call.1} parent=11 // pred_fallthru
          _
        // Predicated region
        $region33: #{tpu_custom_call.1} parent=11 // pred_check
          %p312 = pneg %p172
        $region34: #{tpu_custom_call.1} parent=11 // pred_check_branch
          %314 = sbr.rel (%p312) target = $region36
        $region35: #{tpu_custom_call.1} parent=11 // pred_region
          _
        $region36: #{tpu_custom_call.1} parent=11 // pred_fallthru
          _
        // Predicated region
        $region37: #{tpu_custom_call.1} parent=11 // pred_check
          %p315 = pneg %p193
        $region38: #{tpu_custom_call.1} parent=11 // pred_check_branch
          %317 = sbr.rel (%p315) target = $region40
        $region39: #{tpu_custom_call.1} parent=11 // pred_region
          _
        $region40: #{tpu_custom_call.1} parent=11 // pred_fallthru
          _
        // Predicated region
        $region41: #{tpu_custom_call.1} parent=11 // pred_check
          %p318 = pneg %p214
        $region42: #{tpu_custom_call.1} parent=11 // pred_check_branch
          %320 = sbr.rel (%p318) target = $region44
        $region43: #{tpu_custom_call.1} parent=11 // pred_region
          _
        $region44: #{tpu_custom_call.1} parent=11 // pred_fallthru
          _
        // Predicated region
        $region45: #{tpu_custom_call.1} parent=11 // pred_check
          %p321 = pneg %p235
        $region46: #{tpu_custom_call.1} parent=11 // pred_check_branch
          %323 = sbr.rel (%p321) target = $region48
        $region47: #{tpu_custom_call.1} parent=11 // pred_region
          _
        $region48: #{tpu_custom_call.1} parent=11 // pred_fallthru
          _
        // Predicated region
        $region49: #{tpu_custom_call.1} parent=11 // pred_check
          %p324 = pneg %p256
        $region50: #{tpu_custom_call.1} parent=11 // pred_check_branch
          %326 = sbr.rel (%p324) target = $region52
        $region51: #{tpu_custom_call.1} parent=11 // pred_region
          _
        $region52: #{tpu_custom_call.1} parent=11 // pred_fallthru
          _
      $region12: #{tpu_custom_call.1} parent=5 // pred_fallthru
        _
      %p327 = scmp.lt.s32.totalorder %s20, 2
      // Predicated region
      $region53: #{tpu_custom_call.1} parent=5 // pred_check
        %p328 = pneg %p327
      $region54: #{tpu_custom_call.1} parent=5 // pred_check_branch
        %330 = sbr.rel (%p328) target = $region56
      $region55: #{tpu_custom_call.1} parent=5 // pred_region
        // Predicated region
        $region57: #{tpu_custom_call.1} parent=55 // pred_check
          %p331 = pneg %p40
        $region58: #{tpu_custom_call.1} parent=55 // pred_check_branch
          %333 = sbr.rel (%p331) target = $region60
        $region59: #{tpu_custom_call.1} parent=55 // pred_region
          %p334 = scmp.lt.s32.totalorder %s20, 1
          %s335 = scalar_select %p334, %s20, 1
          %s336 = smul.addr %s335, 8
          %s337 = scalar_lea.vmem %s0, %s336
        $region60: #{tpu_custom_call.1} parent=55 // pred_fallthru
          _
      $region56: #{tpu_custom_call.1} parent=5 // pred_fallthru
        _
      %p338 = scmp.le.s32.totalorder 1, %s20
      %p339 = scmp.lt.s32.totalorder %s20, 3
      %p340 = pnand %p338, %p339
      %p341 = pneg %p340
      // Predicated region
      $region61: #{tpu_custom_call.1} parent=5 // pred_check
        _
      $region62: #{tpu_custom_call.1} parent=5 // pred_check_branch
        %343 = sbr.rel (%p340) target = $region64
      $region63: #{tpu_custom_call.1} parent=5 // pred_region
        %s344 = ssub.s32 %s20, 1
        %p345 = scmp.lt.s32.totalorder %s25, 1
        %s346 = scalar_select %p345, %s25, 1
        %s347 = smul.addr %s346, 8
        %s348 = scalar_lea.vmem %s0, %s347
        %p349 = pneg %p46
        %p350 = pneg %p43
        %p351 = pneg %p67
        %p352 = pneg %p64
        %p353 = pneg %p88
        %p354 = pneg %p85
        %p355 = pneg %p109
        %p356 = pneg %p106
        %p357 = pneg %p130
        %p358 = pneg %p127
        %p359 = pneg %p151
        %p360 = pneg %p148
        %p361 = pneg %p172
        %p362 = pneg %p169
        %p363 = pneg %p193
        %p364 = pneg %p190
        %p365 = pneg %p214
        %p366 = pneg %p211
        %p367 = pneg %p235
        %p368 = pneg %p232
        %p369 = pneg %p256
        %p370 = pneg %p253
        %p371 = pneg %p282
        %p372 = pneg %p279
        %s373 = sand.u32 %s269, 1
        %s374 = scalar_lea.sflag [#allocation3], %s373
        %s375 = sand.u32 %s269, 1
        %s376 = smul.addr %s375, 8
        %s377 = scalar_lea.vmem [#allocation2], %s376
        %p378 = scmp.lt.s32.totalorder %s25, 1
        %s379 = scalar_select %p378, %s25, 1
        %s380 = smul.addr %s379, 8
        %s381 = scalar_lea.vmem %s0, %s380
        %v382 = vld [vmem:[%s381] sm:$0xff]
        %vm383 = vcmask 261120
        %v384 = vsel %vm383, %v382, 0.0
        %385 = vadd.xlane.f32.xlu0 %v384
        %v386 = vpop.xlane.xlu0 %385
        %v387 = vrcp.pop 32.0
        %v388 = vmul.f32 %v386, %v387
        %v389 = vsub.f32 %v382, %v388
        %v390 = vmul.f32 %v389, %v389
        %v391 = vsel %vm383, %v390, 0.0
        %392 = vadd.xlane.f32.xlu0 %v391
        %v393 = vpop.xlane.xlu0 %392
        %v394 = vmul.f32 %v393, %v387
        %v395 = vadd.f32 %v394, 1e-05
        %v396 = vrsqrt.pop %v395
        %v397 = vmul.f32 %v389, %v396
        %v398 = vld [vmem:[%s1] sm:$0xff]
        %v399 = vld [vmem:[%s1 + $0x8] sm:$0xff]
        %v400 = vld [vmem:[%s1 + $0x10] sm:$0xff]
        %v401 = vld [vmem:[%s1 + $0x18] sm:$0xff]
        %v402 = vld [vmem:[%s2] sm:$0x1]
        %v404 = vlaneseq
        %v405 = vshrl.u32 %v404, 7
        %v406 = vsub.s32 0, %v405
        %v407 = vrot.slane %v402, %v406
        %v410 = vsel %vm383, %v397, 0
        %412 = vmatprep.subr.mxu0 0.0
        %413 = vmatpush1.msra.mxu0 %v398
        %414 = vmatprep.subr.mxu0 0.0
        %415 = vmatpush1.msra.mxu0 %v399
        %416 = vmatprep.subr.mxu0 0.0
        %417 = vmatpush1.msra.mxu0 %v400
        %418 = vmatprep.subr.mxu0 0.0
        %419 = vmatpush1.msra.mxu0 %v401
        %420 = vmatprep.subr.mxu0 0.0
        %421 = vmatpush1.msra.mxu0 0.0
        %422 = vmatprep.subr.mxu0 0.0
        %423 = vmatpush1.msra.mxu0 0.0
        %424 = vmatprep.subr.mxu0 0.0
        %425 = vmatpush1.msra.mxu0 0.0
        %426 = vmatprep.subr.mxu0 0.0
        %427 = vmatpush1.msra.mxu0 0.0
        %428 = vmatprep.subr.mxu0 0.0
        %429 = vmatpush1.msra.mxu0 0.0
        %430 = vmatprep.subr.mxu0 0.0
        %431 = vmatpush1.msra.mxu0 0.0
        %432 = vmatprep.subr.mxu0 0.0
        %433 = vmatpush1.msra.mxu0 0.0
        %434 = vmatprep.subr.mxu0 0.0
        %435 = vmatpush1.msra.mxu0 0.0
        %436 = vmatprep.subr.mxu0 0.0
        %437 = vmatpush1.msra.mxu0 0.0
        %438 = vmatprep.subr.mxu0 0.0
        %439 = vmatpush1.msra.mxu0 0.0
        %440 = vmatprep.subr.mxu0 0.0
        %441 = vmatpush1.msra.mxu0 0.0
        %442 = vmatprep.subr.mxu0 0.0
        %443 = vmatpush1.msra.mxu0 0.0
        %444 = vmatprep.subr.mxu0 0.0
        %445 = vmatpush1.msra.mxu0 0.0
        %446 = vmatprep.subr.mxu0 0.0
        %447 = vmatpush1.msra.mxu0 0.0
        %448 = vmatprep.subr.mxu0 0.0
        %449 = vmatpush1.msra.mxu0 0.0
        %450 = vmatprep.subr.mxu0 0.0
        %451 = vmatpush1.msra.mxu0 0.0
        %452 = vmatprep.subr.mxu0 0.0
        %453 = vmatpush1.msra.mxu0 0.0
        %454 = vmatprep.subr.mxu0 0.0
        %455 = vmatpush1.msra.mxu0 0.0
        %456 = vmatprep.subr.mxu0 0.0
        %457 = vmatpush1.msra.mxu0 0.0
        %458 = vmatprep.subr.mxu0 0.0
        %459 = vmatpush1.msra.mxu0 0.0
        %460 = vmatprep.subr.mxu0 0.0
        %461 = vmatpush1.msra.mxu0 0.0
        %462 = vmatprep.subr.mxu0 0.0
        %463 = vmatpush1.msra.mxu0 0.0
        %464 = vmatprep.subr.mxu0 0.0
        %465 = vmatpush1.msra.mxu0 0.0
        %466 = vmatprep.subr.mxu0 0.0
        %467 = vmatpush1.msra.mxu0 0.0
        %468 = vmatprep.subr.mxu0 0.0
        %469 = vmatpush1.msra.mxu0 0.0
        %470 = vmatprep.subr.mxu0 0.0
        %471 = vmatpush1.msra.mxu0 0.0
        %472 = vmatprep.subr.mxu0 0.0
        %473 = vmatpush1.msra.mxu0 0.0
        %474 = vmatprep.subr.mxu0 0.0
        %475 = vmatpush1.msra.mxu0 0.0
        %476 = vmatprep.mubr.f32.mxu0 0.0
        %477 = vmatmul.mubr.f32.gmra.mrb[0].mxu0 %v410
        %v478 = vpop.f32.mrb[0].mxu0
        %v479 = vadd.f32 %v407, %v478
        %v480 = vpop.f32.mrb[0].mxu0
        %481 = vdwg.mxu0
        %v482 = vlaneseq
        %v483 = vand.u32 %v482, 127
        %vm484 = vcmp.ge.s32.totalorder %v483, 0
        %vm485 = vcmp.lt.s32.totalorder %v483, 8
        %vm486 = vmand %vm484, %vm485
        %v487 = vsel %vm486, 1, 0
        %v488 = vcvt.s32.f32 %v487
        %v489 = vmul.f32 %v488, 0.35355338
        %v490 = vmul.f32 %v479, %v489
        %492 = vrot.lane.b32.xlu0 %v479, 96
        %v493 = vpop.permute.xlu0 %492
        %v495 = vsel %vm383, %v490, 0
        %v497 = vsel %vm383, %v493, 0
        %499 = vmatprep.subr.mxu0 0.0
        %500 = vmatpush1.xpose.msra.mxu0 %v497
        %501 = vmatprep.subr.mxu0 0.0
        %502 = vmatpush1.xpose.msra.mxu0 0.0
        %503 = vmatprep.subr.mxu0 0.0
        %504 = vmatpush1.xpose.msra.mxu0 0.0
        %505 = vmatprep.subr.mxu0 0.0
        %506 = vmatpush1.xpose.msra.mxu0 0.0
        %507 = vmatprep.subr.mxu0 0.0
        %508 = vmatpush1.xpose.msra.mxu0 0.0
        %509 = vmatprep.subr.mxu0 0.0
        %510 = vmatpush1.xpose.msra.mxu0 0.0
        %511 = vmatprep.subr.mxu0 0.0
        %512 = vmatpush1.xpose.msra.mxu0 0.0
        %513 = vmatprep.subr.mxu0 0.0
        %514 = vmatpush1.xpose.msra.mxu0 0.0
        %515 = vmatprep.subr.mxu0 0.0
        %516 = vmatpush1.xpose.msra.mxu0 0.0
        %517 = vmatprep.subr.mxu0 0.0
        %518 = vmatpush1.xpose.msra.mxu0 0.0
        %519 = vmatprep.subr.mxu0 0.0
        %520 = vmatpush1.xpose.msra.mxu0 0.0
        %521 = vmatprep.subr.mxu0 0.0
        %522 = vmatpush1.xpose.msra.mxu0 0.0
        %523 = vmatprep.subr.mxu0 0.0
        %524 = vmatpush1.xpose.msra.mxu0 0.0
        %525 = vmatprep.subr.mxu0 0.0
        %526 = vmatpush1.xpose.msra.mxu0 0.0
        %527 = vmatprep.subr.mxu0 0.0
        %528 = vmatpush1.xpose.msra.mxu0 0.0
        %529 = vmatprep.subr.mxu0 0.0
        %530 = vmatpush1.xpose.msra.mxu0 0.0
        %531 = vmatprep.subr.mxu0 0.0
        %532 = vmatpush1.xpose.msra.mxu0 0.0
        %533 = vmatprep.subr.mxu0 0.0
        %534 = vmatpush1.xpose.msra.mxu0 0.0
        %535 = vmatprep.subr.mxu0 0.0
        %536 = vmatpush1.xpose.msra.mxu0 0.0
        %537 = vmatprep.subr.mxu0 0.0
        %538 = vmatpush1.xpose.msra.mxu0 0.0
        %539 = vmatprep.subr.mxu0 0.0
        %540 = vmatpush1.xpose.msra.mxu0 0.0
        %541 = vmatprep.subr.mxu0 0.0
        %542 = vmatpush1.xpose.msra.mxu0 0.0
        %543 = vmatprep.subr.mxu0 0.0
        %544 = vmatpush1.xpose.msra.mxu0 0.0
        %545 = vmatprep.subr.mxu0 0.0
        %546 = vmatpush1.xpose.msra.mxu0 0.0
        %547 = vmatprep.subr.mxu0 0.0
        %548 = vmatpush1.xpose.msra.mxu0 0.0
        %549 = vmatprep.subr.mxu0 0.0
        %550 = vmatpush1.xpose.msra.mxu0 0.0
        %551 = vmatprep.subr.mxu0 0.0
        %552 = vmatpush1.xpose.msra.mxu0 0.0
        %553 = vmatprep.subr.mxu0 0.0
        %554 = vmatpush1.xpose.msra.mxu0 0.0
        %555 = vmatprep.subr.mxu0 0.0
        %556 = vmatpush1.xpose.msra.mxu0 0.0
        %557 = vmatprep.subr.mxu0 0.0
        %558 = vmatpush1.xpose.msra.mxu0 0.0
        %559 = vmatprep.subr.mxu0 0.0
        %560 = vmatpush1.xpose.msra.mxu0 0.0
        %561 = vmatprep.subr.mxu0 0.0
        %562 = vmatpush1.xpose.msra.mxu0 0.0
        %563 = vmatprep.mubr.f32.mxu0 0.0
        %564 = vmatmul.mubr.f32.gmra.mrb[0].mxu0 %v495
        %v565 = vpop.f32.mrb[0].mxu0
        %v566 = vadd.f32 0.0, %v565
        %v567 = vpop.f32.mrb[0].mxu0
        %568 = vdwg.mxu0
        %vm569 = vcmask 64512
        %v570 = vsel %vm569, %v566, -inf
        %571 = vmax.xlane.f32.xlu0 %v570
        %v572 = vpop.xlane.xlu0 %571
        %v573 = vsub.f32 %v566, %v572
        %v574 = vmul.f32 %v573, 1.442695
        %v575 = vpow.pop %v574
        %v576 = vsel %vm569, %v575, 0.0
        %577 = vadd.xlane.f32.xlu0 %v576
        %v578 = vpop.xlane.xlu0 %577
        %v579 = vrcp.pop %v578
        %v580 = vmul.f32 %v575, %v579
        %582 = vrot.lane.b32.xlu0 %v488, 64
        %v583 = vpop.permute.xlu0 %582
        %v585 = vmul.f32 %v479, %v583
        %vm586 = vcmp.ge.s32.totalorder %v483, 8
        %vm587 = vcmp.lt.s32.totalorder %v483, 16
        %vm588 = vmand %vm586, %vm587
        %v589 = vsel %vm588, 1, 0
        %v590 = vcvt.s32.f32 %v589
        %v591 = vmul.f32 %v590, 0.35355338
        %v592 = vmul.f32 %v479, %v591
        %v594 = vsel %vm383, %v592, 0
        %596 = vmatprep.subr.mxu0 0.0
        %597 = vmatpush1.xpose.msra.mxu0 %v497
        %598 = vmatprep.subr.mxu0 0.0
        %599 = vmatpush1.xpose.msra.mxu0 0.0
        %600 = vmatprep.subr.mxu0 0.0
        %601 = vmatpush1.xpose.msra.mxu0 0.0
        %602 = vmatprep.subr.mxu0 0.0
        %603 = vmatpush1.xpose.msra.mxu0 0.0
        %604 = vmatprep.subr.mxu0 0.0
        %605 = vmatpush1.xpose.msra.mxu0 0.0
        %606 = vmatprep.subr.mxu0 0.0
        %607 = vmatpush1.xpose.msra.mxu0 0.0
        %608 = vmatprep.subr.mxu0 0.0
        %609 = vmatpush1.xpose.msra.mxu0 0.0
        %610 = vmatprep.subr.mxu0 0.0
        %611 = vmatpush1.xpose.msra.mxu0 0.0
        %612 = vmatprep.subr.mxu0 0.0
        %613 = vmatpush1.xpose.msra.mxu0 0.0
        %614 = vmatprep.subr.mxu0 0.0
        %615 = vmatpush1.xpose.msra.mxu0 0.0
        %616 = vmatprep.subr.mxu0 0.0
        %617 = vmatpush1.xpose.msra.mxu0 0.0
        %618 = vmatprep.subr.mxu0 0.0
        %619 = vmatpush1.xpose.msra.mxu0 0.0
        %620 = vmatprep.subr.mxu0 0.0
        %621 = vmatpush1.xpose.msra.mxu0 0.0
        %622 = vmatprep.subr.mxu0 0.0
        %623 = vmatpush1.xpose.msra.mxu0 0.0
        %624 = vmatprep.subr.mxu0 0.0
        %625 = vmatpush1.xpose.msra.mxu0 0.0
        %626 = vmatprep.subr.mxu0 0.0
        %627 = vmatpush1.xpose.msra.mxu0 0.0
        %628 = vmatprep.subr.mxu0 0.0
        %629 = vmatpush1.xpose.msra.mxu0 0.0
        %630 = vmatprep.subr.mxu0 0.0
        %631 = vmatpush1.xpose.msra.mxu0 0.0
        %632 = vmatprep.subr.mxu0 0.0
        %633 = vmatpush1.xpose.msra.mxu0 0.0
        %634 = vmatprep.subr.mxu0 0.0
        %635 = vmatpush1.xpose.msra.mxu0 0.0
        %636 = vmatprep.subr.mxu0 0.0
        %637 = vmatpush1.xpose.msra.mxu0 0.0
        %638 = vmatprep.subr.mxu0 0.0
        %639 = vmatpush1.xpose.msra.mxu0 0.0
        %640 = vmatprep.subr.mxu0 0.0
        %641 = vmatpush1.xpose.msra.mxu0 0.0
        %642 = vmatprep.subr.mxu0 0.0
        %643 = vmatpush1.xpose.msra.mxu0 0.0
        %644 = vmatprep.subr.mxu0 0.0
        %645 = vmatpush1.xpose.msra.mxu0 0.0
        %646 = vmatprep.subr.mxu0 0.0
        %647 = vmatpush1.xpose.msra.mxu0 0.0
        %648 = vmatprep.subr.mxu0 0.0
        %649 = vmatpush1.xpose.msra.mxu0 0.0
        %650 = vmatprep.subr.mxu0 0.0
        %651 = vmatpush1.xpose.msra.mxu0 0.0
        %652 = vmatprep.subr.mxu0 0.0
        %653 = vmatpush1.xpose.msra.mxu0 0.0
        %654 = vmatprep.subr.mxu0 0.0
        %655 = vmatpush1.xpose.msra.mxu0 0.0
        %656 = vmatprep.subr.mxu0 0.0
        %657 = vmatpush1.xpose.msra.mxu0 0.0
        %658 = vmatprep.subr.mxu0 0.0
        %659 = vmatpush1.xpose.msra.mxu0 0.0
        %660 = vmatprep.mubr.f32.mxu0 0.0
        %661 = vmatmul.mubr.f32.gmra.mrb[0].mxu0 %v594
        %v662 = vpop.f32.mrb[0].mxu0
        %v663 = vadd.f32 0.0, %v662
        %v664 = vpop.f32.mrb[0].mxu0
        %665 = vdwg.mxu0
        %v666 = vsel %vm569, %v663, -inf
        %667 = vmax.xlane.f32.xlu0 %v666
        %v668 = vpop.xlane.xlu0 %667
        %v669 = vsub.f32 %v663, %v668
        %v670 = vmul.f32 %v669, 1.442695
        %v671 = vpow.pop %v670
        %v672 = vsel %vm569, %v671, 0.0
        %673 = vadd.xlane.f32.xlu0 %v672
        %v674 = vpop.xlane.xlu0 %673
        %v675 = vrcp.pop %v674
        %v676 = vmul.f32 %v671, %v675
        %678 = vrot.lane.b32.xlu0 %v590, 64
        %v679 = vpop.permute.xlu0 %678
        %v681 = vmul.f32 %v479, %v679
        %683 = vrot.lane.b32.xlu0 %v681, 64
        %v684 = vpop.permute.xlu0 %683
        %v687 = vsel %vm569, %v676, 0
        %689 = vmatprep.subr.mxu0 0.0
        %690 = vmatpush1.msra.mxu0 %v684
        %691 = vmatprep.subr.mxu0 0.0
        %692 = vmatpush1.msra.mxu0 0.0
        %693 = vmatprep.subr.mxu0 0.0
        %694 = vmatpush1.msra.mxu0 0.0
        %695 = vmatprep.subr.mxu0 0.0
        %696 = vmatpush1.msra.mxu0 0.0
        %697 = vmatprep.subr.mxu0 0.0
        %698 = vmatpush1.msra.mxu0 0.0
        %699 = vmatprep.subr.mxu0 0.0
        %700 = vmatpush1.msra.mxu0 0.0
        %701 = vmatprep.subr.mxu0 0.0
        %702 = vmatpush1.msra.mxu0 0.0
        %703 = vmatprep.subr.mxu0 0.0
        %704 = vmatpush1.msra.mxu0 0.0
        %705 = vmatprep.subr.mxu0 0.0
        %706 = vmatpush1.msra.mxu0 0.0
        %707 = vmatprep.subr.mxu0 0.0
        %708 = vmatpush1.msra.mxu0 0.0
        %709 = vmatprep.subr.mxu0 0.0
        %710 = vmatpush1.msra.mxu0 0.0
        %711 = vmatprep.subr.mxu0 0.0
        %712 = vmatpush1.msra.mxu0 0.0
        %713 = vmatprep.subr.mxu0 0.0
        %714 = vmatpush1.msra.mxu0 0.0
        %715 = vmatprep.subr.mxu0 0.0
        %716 = vmatpush1.msra.mxu0 0.0
        %717 = vmatprep.subr.mxu0 0.0
        %718 = vmatpush1.msra.mxu0 0.0
        %719 = vmatprep.subr.mxu0 0.0
        %720 = vmatpush1.msra.mxu0 0.0
        %721 = vmatprep.subr.mxu0 0.0
        %722 = vmatpush1.msra.mxu0 0.0
        %723 = vmatprep.subr.mxu0 0.0
        %724 = vmatpush1.msra.mxu0 0.0
        %725 = vmatprep.subr.mxu0 0.0
        %726 = vmatpush1.msra.mxu0 0.0
        %727 = vmatprep.subr.mxu0 0.0
        %728 = vmatpush1.msra.mxu0 0.0
        %729 = vmatprep.subr.mxu0 0.0
        %730 = vmatpush1.msra.mxu0 0.0
        %731 = vmatprep.subr.mxu0 0.0
        %732 = vmatpush1.msra.mxu0 0.0
        %733 = vmatprep.subr.mxu0 0.0
        %734 = vmatpush1.msra.mxu0 0.0
        %735 = vmatprep.subr.mxu0 0.0
        %736 = vmatpush1.msra.mxu0 0.0
        %737 = vmatprep.subr.mxu0 0.0
        %738 = vmatpush1.msra.mxu0 0.0
        %739 = vmatprep.subr.mxu0 0.0
        %740 = vmatpush1.msra.mxu0 0.0
        %741 = vmatprep.subr.mxu0 0.0
        %742 = vmatpush1.msra.mxu0 0.0
        %743 = vmatprep.subr.mxu0 0.0
        %744 = vmatpush1.msra.mxu0 0.0
        %745 = vmatprep.subr.mxu0 0.0
        %746 = vmatpush1.msra.mxu0 0.0
        %747 = vmatprep.subr.mxu0 0.0
        %748 = vmatpush1.msra.mxu0 0.0
        %749 = vmatprep.subr.mxu0 0.0
        %750 = vmatpush1.msra.mxu0 0.0
        %751 = vmatprep.subr.mxu0 0.0
        %752 = vmatpush1.msra.mxu0 0.0
        %753 = vmatprep.mubr.f32.mxu0 0.0
        %754 = vmatmul.mubr.f32.gmra.mrb[0].mxu0 %v687
        %v755 = vpop.f32.mrb[0].mxu0
        %v756 = vadd.f32 0.0, %v755
        %v757 = vpop.f32.mrb[0].mxu0
        %758 = vdwg.mxu0
        %760 = vrot.lane.b32.xlu0 %v585, 64
        %v761 = vpop.permute.xlu0 %760
        %v764 = vsel %vm569, %v580, 0
        %766 = vmatprep.subr.mxu0 0.0
        %767 = vmatpush1.msra.mxu0 %v761
        %768 = vmatprep.subr.mxu0 0.0
        %769 = vmatpush1.msra.mxu0 0.0
        %770 = vmatprep.subr.mxu0 0.0
        %771 = vmatpush1.msra.mxu0 0.0
        %772 = vmatprep.subr.mxu0 0.0
        %773 = vmatpush1.msra.mxu0 0.0
        %774 = vmatprep.subr.mxu0 0.0
        %775 = vmatpush1.msra.mxu0 0.0
        %776 = vmatprep.subr.mxu0 0.0
        %777 = vmatpush1.msra.mxu0 0.0
        %778 = vmatprep.subr.mxu0 0.0
        %779 = vmatpush1.msra.mxu0 0.0
        %780 = vmatprep.subr.mxu0 0.0
        %781 = vmatpush1.msra.mxu0 0.0
        %782 = vmatprep.subr.mxu0 0.0
        %783 = vmatpush1.msra.mxu0 0.0
        %784 = vmatprep.subr.mxu0 0.0
        %785 = vmatpush1.msra.mxu0 0.0
        %786 = vmatprep.subr.mxu0 0.0
        %787 = vmatpush1.msra.mxu0 0.0
        %788 = vmatprep.subr.mxu0 0.0
        %789 = vmatpush1.msra.mxu0 0.0
        %790 = vmatprep.subr.mxu0 0.0
        %791 = vmatpush1.msra.mxu0 0.0
        %792 = vmatprep.subr.mxu0 0.0
        %793 = vmatpush1.msra.mxu0 0.0
        %794 = vmatprep.subr.mxu0 0.0
        %795 = vmatpush1.msra.mxu0 0.0
        %796 = vmatprep.subr.mxu0 0.0
        %797 = vmatpush1.msra.mxu0 0.0
        %798 = vmatprep.subr.mxu0 0.0
        %799 = vmatpush1.msra.mxu0 0.0
        %800 = vmatprep.subr.mxu0 0.0
        %801 = vmatpush1.msra.mxu0 0.0
        %802 = vmatprep.subr.mxu0 0.0
        %803 = vmatpush1.msra.mxu0 0.0
        %804 = vmatprep.subr.mxu0 0.0
        %805 = vmatpush1.msra.mxu0 0.0
        %806 = vmatprep.subr.mxu0 0.0
        %807 = vmatpush1.msra.mxu0 0.0
        %808 = vmatprep.subr.mxu0 0.0
        %809 = vmatpush1.msra.mxu0 0.0
        %810 = vmatprep.subr.mxu0 0.0
        %811 = vmatpush1.msra.mxu0 0.0
        %812 = vmatprep.subr.mxu0 0.0
        %813 = vmatpush1.msra.mxu0 0.0
        %814 = vmatprep.subr.mxu0 0.0
        %815 = vmatpush1.msra.mxu0 0.0
        %816 = vmatprep.subr.mxu0 0.0
        %817 = vmatpush1.msra.mxu0 0.0
        %818 = vmatprep.subr.mxu0 0.0
        %819 = vmatpush1.msra.mxu0 0.0
        %820 = vmatprep.subr.mxu0 0.0
        %821 = vmatpush1.msra.mxu0 0.0
        %822 = vmatprep.subr.mxu0 0.0
        %823 = vmatpush1.msra.mxu0 0.0
        %824 = vmatprep.subr.mxu0 0.0
        %825 = vmatpush1.msra.mxu0 0.0
        %826 = vmatprep.subr.mxu0 0.0
        %827 = vmatpush1.msra.mxu0 0.0
        %828 = vmatprep.subr.mxu0 0.0
        %829 = vmatpush1.msra.mxu0 0.0
        %830 = vmatprep.mubr.f32.mxu0 0.0
        %831 = vmatmul.mubr.f32.gmra.mrb[0].mxu0 %v764
        %v832 = vpop.f32.mrb[0].mxu0
        %v833 = vadd.f32 %v756, %v832
        %v834 = vpop.f32.mrb[0].mxu0
        %835 = vdwg.mxu0
        %vm836 = vcmp.ge.s32.totalorder %v483, 16
        %vm837 = vcmp.lt.s32.totalorder %v483, 24
        %vm838 = vmand %vm836, %vm837
        %v839 = vsel %vm838, 1, 0
        %v840 = vcvt.s32.f32 %v839
        %v841 = vmul.f32 %v840, 0.35355338
        %v842 = vmul.f32 %v479, %v841
        %v844 = vsel %vm383, %v842, 0
        %846 = vmatprep.subr.mxu0 0.0
        %847 = vmatpush1.xpose.msra.mxu0 %v497
        %848 = vmatprep.subr.mxu0 0.0
        %849 = vmatpush1.xpose.msra.mxu0 0.0
        %850 = vmatprep.subr.mxu0 0.0
        %851 = vmatpush1.xpose.msra.mxu0 0.0
        %852 = vmatprep.subr.mxu0 0.0
        %853 = vmatpush1.xpose.msra.mxu0 0.0
        %854 = vmatprep.subr.mxu0 0.0
        %855 = vmatpush1.xpose.msra.mxu0 0.0
        %856 = vmatprep.subr.mxu0 0.0
        %857 = vmatpush1.xpose.msra.mxu0 0.0
        %858 = vmatprep.subr.mxu0 0.0
        %859 = vmatpush1.xpose.msra.mxu0 0.0
        %860 = vmatprep.subr.mxu0 0.0
        %861 = vmatpush1.xpose.msra.mxu0 0.0
        %862 = vmatprep.subr.mxu0 0.0
        %863 = vmatpush1.xpose.msra.mxu0 0.0
        %864 = vmatprep.subr.mxu0 0.0
        %865 = vmatpush1.xpose.msra.mxu0 0.0
        %866 = vmatprep.subr.mxu0 0.0
        %867 = vmatpush1.xpose.msra.mxu0 0.0
        %868 = vmatprep.subr.mxu0 0.0
        %869 = vmatpush1.xpose.msra.mxu0 0.0
        %870 = vmatprep.subr.mxu0 0.0
        %871 = vmatpush1.xpose.msra.mxu0 0.0
        %872 = vmatprep.subr.mxu0 0.0
        %873 = vmatpush1.xpose.msra.mxu0 0.0
        %874 = vmatprep.subr.mxu0 0.0
        %875 = vmatpush1.xpose.msra.mxu0 0.0
        %876 = vmatprep.subr.mxu0 0.0
        %877 = vmatpush1.xpose.msra.mxu0 0.0
        %878 = vmatprep.subr.mxu0 0.0
        %879 = vmatpush1.xpose.msra.mxu0 0.0
        %880 = vmatprep.subr.mxu0 0.0
        %881 = vmatpush1.xpose.msra.mxu0 0.0
        %882 = vmatprep.subr.mxu0 0.0
        %883 = vmatpush1.xpose.msra.mxu0 0.0
        %884 = vmatprep.subr.mxu0 0.0
        %885 = vmatpush1.xpose.msra.mxu0 0.0
        %886 = vmatprep.subr.mxu0 0.0
        %887 = vmatpush1.xpose.msra.mxu0 0.0
        %888 = vmatprep.subr.mxu0 0.0
        %889 = vmatpush1.xpose.msra.mxu0 0.0
        %890 = vmatprep.subr.mxu0 0.0
        %891 = vmatpush1.xpose.msra.mxu0 0.0
        %892 = vmatprep.subr.mxu0 0.0
        %893 = vmatpush1.xpose.msra.mxu0 0.0
        %894 = vmatprep.subr.mxu0 0.0
        %895 = vmatpush1.xpose.msra.mxu0 0.0
        %896 = vmatprep.subr.mxu0 0.0
        %897 = vmatpush1.xpose.msra.mxu0 0.0
        %898 = vmatprep.subr.mxu0 0.0
        %899 = vmatpush1.xpose.msra.mxu0 0.0
        %900 = vmatprep.subr.mxu0 0.0
        %901 = vmatpush1.xpose.msra.mxu0 0.0
        %902 = vmatprep.subr.mxu0 0.0
        %903 = vmatpush1.xpose.msra.mxu0 0.0
        %904 = vmatprep.subr.mxu0 0.0
        %905 = vmatpush1.xpose.msra.mxu0 0.0
        %906 = vmatprep.subr.mxu0 0.0
        %907 = vmatpush1.xpose.msra.mxu0 0.0
        %908 = vmatprep.subr.mxu0 0.0
        %909 = vmatpush1.xpose.msra.mxu0 0.0
        %910 = vmatprep.mubr.f32.mxu0 0.0
        %911 = vmatmul.mubr.f32.gmra.mrb[0].mxu0 %v844
        %v912 = vpop.f32.mrb[0].mxu0
        %v913 = vadd.f32 0.0, %v912
        %v914 = vpop.f32.mrb[0].mxu0
        %915 = vdwg.mxu0
        %v916 = vsel %vm569, %v913, -inf
        %917 = vmax.xlane.f32.xlu0 %v916
        %v918 = vpop.xlane.xlu0 %917
        %v919 = vsub.f32 %v913, %v918
        %v920 = vmul.f32 %v919, 1.442695
        %v921 = vpow.pop %v920
        %v922 = vsel %vm569, %v921, 0.0
        %923 = vadd.xlane.f32.xlu0 %v922
        %v924 = vpop.xlane.xlu0 %923
        %v925 = vrcp.pop %v924
        %v926 = vmul.f32 %v921, %v925
        %928 = vrot.lane.b32.xlu0 %v840, 64
        %v929 = vpop.permute.xlu0 %928
        %v931 = vmul.f32 %v479, %v929
        %933 = vrot.lane.b32.xlu0 %v931, 64
        %v934 = vpop.permute.xlu0 %933
        %v937 = vsel %vm569, %v926, 0
        %939 = vmatprep.subr.mxu0 0.0
        %940 = vmatpush1.msra.mxu0 %v934
        %941 = vmatprep.subr.mxu0 0.0
        %942 = vmatpush1.msra.mxu0 0.0
        %943 = vmatprep.subr.mxu0 0.0
        %944 = vmatpush1.msra.mxu0 0.0
        %945 = vmatprep.subr.mxu0 0.0
        %946 = vmatpush1.msra.mxu0 0.0
        %947 = vmatprep.subr.mxu0 0.0
        %948 = vmatpush1.msra.mxu0 0.0
        %949 = vmatprep.subr.mxu0 0.0
        %950 = vmatpush1.msra.mxu0 0.0
        %951 = vmatprep.subr.mxu0 0.0
        %952 = vmatpush1.msra.mxu0 0.0
        %953 = vmatprep.subr.mxu0 0.0
        %954 = vmatpush1.msra.mxu0 0.0
        %955 = vmatprep.subr.mxu0 0.0
        %956 = vmatpush1.msra.mxu0 0.0
        %957 = vmatprep.subr.mxu0 0.0
        %958 = vmatpush1.msra.mxu0 0.0
        %959 = vmatprep.subr.mxu0 0.0
        %960 = vmatpush1.msra.mxu0 0.0
        %961 = vmatprep.subr.mxu0 0.0
        %962 = vmatpush1.msra.mxu0 0.0
        %963 = vmatprep.subr.mxu0 0.0
        %964 = vmatpush1.msra.mxu0 0.0
        %965 = vmatprep.subr.mxu0 0.0
        %966 = vmatpush1.msra.mxu0 0.0
        %967 = vmatprep.subr.mxu0 0.0
        %968 = vmatpush1.msra.mxu0 0.0
        %969 = vmatprep.subr.mxu0 0.0
        %970 = vmatpush1.msra.mxu0 0.0
        %971 = vmatprep.subr.mxu0 0.0
        %972 = vmatpush1.msra.mxu0 0.0
        %973 = vmatprep.subr.mxu0 0.0
        %974 = vmatpush1.msra.mxu0 0.0
        %975 = vmatprep.subr.mxu0 0.0
        %976 = vmatpush1.msra.mxu0 0.0
        %977 = vmatprep.subr.mxu0 0.0
        %978 = vmatpush1.msra.mxu0 0.0
        %979 = vmatprep.subr.mxu0 0.0
        %980 = vmatpush1.msra.mxu0 0.0
        %981 = vmatprep.subr.mxu0 0.0
        %982 = vmatpush1.msra.mxu0 0.0
        %983 = vmatprep.subr.mxu0 0.0
        %984 = vmatpush1.msra.mxu0 0.0
        %985 = vmatprep.subr.mxu0 0.0
        %986 = vmatpush1.msra.mxu0 0.0
        %987 = vmatprep.subr.mxu0 0.0
        %988 = vmatpush1.msra.mxu0 0.0
        %989 = vmatprep.subr.mxu0 0.0
        %990 = vmatpush1.msra.mxu0 0.0
        %991 = vmatprep.subr.mxu0 0.0
        %992 = vmatpush1.msra.mxu0 0.0
        %993 = vmatprep.subr.mxu0 0.0
        %994 = vmatpush1.msra.mxu0 0.0
        %995 = vmatprep.subr.mxu0 0.0
        %996 = vmatpush1.msra.mxu0 0.0
        %997 = vmatprep.subr.mxu0 0.0
        %998 = vmatpush1.msra.mxu0 0.0
        %999 = vmatprep.subr.mxu0 0.0
        %1000 = vmatpush1.msra.mxu0 0.0
        %1001 = vmatprep.subr.mxu0 0.0
        %1002 = vmatpush1.msra.mxu0 0.0
        %1003 = vmatprep.mubr.f32.mxu0 0.0
        %1004 = vmatmul.mubr.f32.gmra.mrb[0].mxu0 %v937
        %v1005 = vpop.f32.mrb[0].mxu0
        %v1006 = vadd.f32 0.0, %v1005
        %v1007 = vpop.f32.mrb[0].mxu0
        %1008 = vdwg.mxu0
        %v1009 = vadd.f32 %v833, %v1006
        %vm1010 = vcmp.ge.s32.totalorder %v483, 24
        %vm1011 = vcmp.lt.s32.totalorder %v483, 32
        %vm1012 = vmand %vm1010, %vm1011
        %v1013 = vsel %vm1012, 1, 0
        %v1014 = vcvt.s32.f32 %v1013
        %v1015 = vmul.f32 %v1014, 0.35355338
        %v1016 = vmul.f32 %v479, %v1015
        %v1018 = vsel %vm383, %v1016, 0
        %1020 = vmatprep.subr.mxu0 0.0
        %1021 = vmatpush1.xpose.msra.mxu0 %v497
        %1022 = vmatprep.subr.mxu0 0.0
        %1023 = vmatpush1.xpose.msra.mxu0 0.0
        %1024 = vmatprep.subr.mxu0 0.0
        %1025 = vmatpush1.xpose.msra.mxu0 0.0
        %1026 = vmatprep.subr.mxu0 0.0
        %1027 = vmatpush1.xpose.msra.mxu0 0.0
        %1028 = vmatprep.subr.mxu0 0.0
        %1029 = vmatpush1.xpose.msra.mxu0 0.0
        %1030 = vmatprep.subr.mxu0 0.0
        %1031 = vmatpush1.xpose.msra.mxu0 0.0
        %1032 = vmatprep.subr.mxu0 0.0
        %1033 = vmatpush1.xpose.msra.mxu0 0.0
        %1034 = vmatprep.subr.mxu0 0.0
        %1035 = vmatpush1.xpose.msra.mxu0 0.0
        %1036 = vmatprep.subr.mxu0 0.0
        %1037 = vmatpush1.xpose.msra.mxu0 0.0
        %1038 = vmatprep.subr.mxu0 0.0
        %1039 = vmatpush1.xpose.msra.mxu0 0.0
        %1040 = vmatprep.subr.mxu0 0.0
        %1041 = vmatpush1.xpose.msra.mxu0 0.0
        %1042 = vmatprep.subr.mxu0 0.0
        %1043 = vmatpush1.xpose.msra.mxu0 0.0
        %1044 = vmatprep.subr.mxu0 0.0
        %1045 = vmatpush1.xpose.msra.mxu0 0.0
        %1046 = vmatprep.subr.mxu0 0.0
        %1047 = vmatpush1.xpose.msra.mxu0 0.0
        %1048 = vmatprep.subr.mxu0 0.0
        %1049 = vmatpush1.xpose.msra.mxu0 0.0
        %1050 = vmatprep.subr.mxu0 0.0
        %1051 = vmatpush1.xpose.msra.mxu0 0.0
        %1052 = vmatprep.subr.mxu0 0.0
        %1053 = vmatpush1.xpose.msra.mxu0 0.0
        %1054 = vmatprep.subr.mxu0 0.0
        %1055 = vmatpush1.xpose.msra.mxu0 0.0
        %1056 = vmatprep.subr.mxu0 0.0
        %1057 = vmatpush1.xpose.msra.mxu0 0.0
        %1058 = vmatprep.subr.mxu0 0.0
        %1059 = vmatpush1.xpose.msra.mxu0 0.0
        %1060 = vmatprep.subr.mxu0 0.0
        %1061 = vmatpush1.xpose.msra.mxu0 0.0
        %1062 = vmatprep.subr.mxu0 0.0
        %1063 = vmatpush1.xpose.msra.mxu0 0.0
        %1064 = vmatprep.subr.mxu0 0.0
        %1065 = vmatpush1.xpose.msra.mxu0 0.0
        %1066 = vmatprep.subr.mxu0 0.0
        %1067 = vmatpush1.xpose.msra.mxu0 0.0
        %1068 = vmatprep.subr.mxu0 0.0
        %1069 = vmatpush1.xpose.msra.mxu0 0.0
        %1070 = vmatprep.subr.mxu0 0.0
        %1071 = vmatpush1.xpose.msra.mxu0 0.0
        %1072 = vmatprep.subr.mxu0 0.0
        %1073 = vmatpush1.xpose.msra.mxu0 0.0
        %1074 = vmatprep.subr.mxu0 0.0
        %1075 = vmatpush1.xpose.msra.mxu0 0.0
        %1076 = vmatprep.subr.mxu0 0.0
        %1077 = vmatpush1.xpose.msra.mxu0 0.0
        %1078 = vmatprep.subr.mxu0 0.0
        %1079 = vmatpush1.xpose.msra.mxu0 0.0
        %1080 = vmatprep.subr.mxu0 0.0
        %1081 = vmatpush1.xpose.msra.mxu0 0.0
        %1082 = vmatprep.subr.mxu0 0.0
        %1083 = vmatpush1.xpose.msra.mxu0 0.0
        %1084 = vmatprep.mubr.f32.mxu0 0.0
        %1085 = vmatmul.mubr.f32.gmra.mrb[0].mxu0 %v1018
        %v1086 = vpop.f32.mrb[0].mxu0
        %v1087 = vadd.f32 0.0, %v1086
        %v1088 = vpop.f32.mrb[0].mxu0
        %1089 = vdwg.mxu0
        %v1090 = vsel %vm569, %v1087, -inf
        %1091 = vmax.xlane.f32.xlu0 %v1090
        %v1092 = vpop.xlane.xlu0 %1091
        %v1093 = vsub.f32 %v1087, %v1092
        %v1094 = vmul.f32 %v1093, 1.442695
        %v1095 = vpow.pop %v1094
        %v1096 = vsel %vm569, %v1095, 0.0
        %1097 = vadd.xlane.f32.xlu0 %v1096
        %v1098 = vpop.xlane.xlu0 %1097
        %v1099 = vrcp.pop %v1098
        %v1100 = vmul.f32 %v1095, %v1099
        %1102 = vrot.lane.b32.xlu0 %v1014, 64
        %v1103 = vpop.permute.xlu0 %1102
        %v1105 = vmul.f32 %v479, %v1103
        %1107 = vrot.lane.b32.xlu0 %v1105, 64
        %v1108 = vpop.permute.xlu0 %1107
        %v1111 = vsel %vm569, %v1100, 0
        %1113 = vmatprep.subr.mxu0 0.0
        %1114 = vmatpush1.msra.mxu0 %v1108
        %1115 = vmatprep.subr.mxu0 0.0
        %1116 = vmatpush1.msra.mxu0 0.0
        %1117 = vmatprep.subr.mxu0 0.0
        %1118 = vmatpush1.msra.mxu0 0.0
        %1119 = vmatprep.subr.mxu0 0.0
        %1120 = vmatpush1.msra.mxu0 0.0
        %1121 = vmatprep.subr.mxu0 0.0
        %1122 = vmatpush1.msra.mxu0 0.0
        %1123 = vmatprep.subr.mxu0 0.0
        %1124 = vmatpush1.msra.mxu0 0.0
        %1125 = vmatprep.subr.mxu0 0.0
        %1126 = vmatpush1.msra.mxu0 0.0
        %1127 = vmatprep.subr.mxu0 0.0
        %1128 = vmatpush1.msra.mxu0 0.0
        %1129 = vmatprep.subr.mxu0 0.0
        %1130 = vmatpush1.msra.mxu0 0.0
        %1131 = vmatprep.subr.mxu0 0.0
        %1132 = vmatpush1.msra.mxu0 0.0
        %1133 = vmatprep.subr.mxu0 0.0
        %1134 = vmatpush1.msra.mxu0 0.0
        %1135 = vmatprep.subr.mxu0 0.0
        %1136 = vmatpush1.msra.mxu0 0.0
        %1137 = vmatprep.subr.mxu0 0.0
        %1138 = vmatpush1.msra.mxu0 0.0
        %1139 = vmatprep.subr.mxu0 0.0
        %1140 = vmatpush1.msra.mxu0 0.0
        %1141 = vmatprep.subr.mxu0 0.0
        %1142 = vmatpush1.msra.mxu0 0.0
        %1143 = vmatprep.subr.mxu0 0.0
        %1144 = vmatpush1.msra.mxu0 0.0
        %1145 = vmatprep.subr.mxu0 0.0
        %1146 = vmatpush1.msra.mxu0 0.0
        %1147 = vmatprep.subr.mxu0 0.0
        %1148 = vmatpush1.msra.mxu0 0.0
        %1149 = vmatprep.subr.mxu0 0.0
        %1150 = vmatpush1.msra.mxu0 0.0
        %1151 = vmatprep.subr.mxu0 0.0
        %1152 = vmatpush1.msra.mxu0 0.0
        %1153 = vmatprep.subr.mxu0 0.0
        %1154 = vmatpush1.msra.mxu0 0.0
        %1155 = vmatprep.subr.mxu0 0.0
        %1156 = vmatpush1.msra.mxu0 0.0
        %1157 = vmatprep.subr.mxu0 0.0
        %1158 = vmatpush1.msra.mxu0 0.0
        %1159 = vmatprep.subr.mxu0 0.0
        %1160 = vmatpush1.msra.mxu0 0.0
        %1161 = vmatprep.subr.mxu0 0.0
        %1162 = vmatpush1.msra.mxu0 0.0
        %1163 = vmatprep.subr.mxu0 0.0
        %1164 = vmatpush1.msra.mxu0 0.0
        %1165 = vmatprep.subr.mxu0 0.0
        %1166 = vmatpush1.msra.mxu0 0.0
        %1167 = vmatprep.subr.mxu0 0.0
        %1168 = vmatpush1.msra.mxu0 0.0
        %1169 = vmatprep.subr.mxu0 0.0
        %1170 = vmatpush1.msra.mxu0 0.0
        %1171 = vmatprep.subr.mxu0 0.0
        %1172 = vmatpush1.msra.mxu0 0.0
        %1173 = vmatprep.subr.mxu0 0.0
        %1174 = vmatpush1.msra.mxu0 0.0
        %1175 = vmatprep.subr.mxu0 0.0
        %1176 = vmatpush1.msra.mxu0 0.0
        %1177 = vmatprep.mubr.f32.mxu0 0.0
        %1178 = vmatmul.mubr.f32.gmra.mrb[0].mxu0 %v1111
        %v1179 = vpop.f32.mrb[0].mxu0
        %v1180 = vadd.f32 0.0, %v1179
        %v1181 = vpop.f32.mrb[0].mxu0
        %1182 = vdwg.mxu0
        %v1183 = vadd.f32 %v1009, %v1180
        %v1184 = vld [vmem:[%s3] sm:$0xff]
        %v1185 = vld [vmem:[%s3 + $0x8] sm:$0xff]
        %v1186 = vld [vmem:[%s3 + $0x10] sm:$0xff]
        %v1187 = vld [vmem:[%s3 + $0x18] sm:$0xff]
        %v1188 = vld [vmem:[%s4] sm:$0x1]
        %v1190 = vlaneseq
        %v1191 = vshrl.u32 %v1190, 7
        %v1192 = vsub.s32 0, %v1191
        %v1193 = vrot.slane %v1188, %v1192
        %v1196 = vsel %vm383, %v1183, 0
        %1198 = vmatprep.subr.mxu0 0.0
        %1199 = vmatpush1.msra.mxu0 %v1184
        %1200 = vmatprep.subr.mxu0 0.0
        %1201 = vmatpush1.msra.mxu0 %v1185
        %1202 = vmatprep.subr.mxu0 0.0
        %1203 = vmatpush1.msra.mxu0 %v1186
        %1204 = vmatprep.subr.mxu0 0.0
        %1205 = vmatpush1.msra.mxu0 %v1187
        %1206 = vmatprep.subr.mxu0 0.0
        %1207 = vmatpush1.msra.mxu0 0.0
        %1208 = vmatprep.subr.mxu0 0.0
        %1209 = vmatpush1.msra.mxu0 0.0
        %1210 = vmatprep.subr.mxu0 0.0
        %1211 = vmatpush1.msra.mxu0 0.0
        %1212 = vmatprep.subr.mxu0 0.0
        %1213 = vmatpush1.msra.mxu0 0.0
        %1214 = vmatprep.subr.mxu0 0.0
        %1215 = vmatpush1.msra.mxu0 0.0
        %1216 = vmatprep.subr.mxu0 0.0
        %1217 = vmatpush1.msra.mxu0 0.0
        %1218 = vmatprep.subr.mxu0 0.0
        %1219 = vmatpush1.msra.mxu0 0.0
        %1220 = vmatprep.subr.mxu0 0.0
        %1221 = vmatpush1.msra.mxu0 0.0
        %1222 = vmatprep.subr.mxu0 0.0
        %1223 = vmatpush1.msra.mxu0 0.0
        %1224 = vmatprep.subr.mxu0 0.0
        %1225 = vmatpush1.msra.mxu0 0.0
        %1226 = vmatprep.subr.mxu0 0.0
        %1227 = vmatpush1.msra.mxu0 0.0
        %1228 = vmatprep.subr.mxu0 0.0
        %1229 = vmatpush1.msra.mxu0 0.0
        %1230 = vmatprep.subr.mxu0 0.0
        %1231 = vmatpush1.msra.mxu0 0.0
        %1232 = vmatprep.subr.mxu0 0.0
        %1233 = vmatpush1.msra.mxu0 0.0
        %1234 = vmatprep.subr.mxu0 0.0
        %1235 = vmatpush1.msra.mxu0 0.0
        %1236 = vmatprep.subr.mxu0 0.0
        %1237 = vmatpush1.msra.mxu0 0.0
        %1238 = vmatprep.subr.mxu0 0.0
        %1239 = vmatpush1.msra.mxu0 0.0
        %1240 = vmatprep.subr.mxu0 0.0
        %1241 = vmatpush1.msra.mxu0 0.0
        %1242 = vmatprep.subr.mxu0 0.0
        %1243 = vmatpush1.msra.mxu0 0.0
        %1244 = vmatprep.subr.mxu0 0.0
        %1245 = vmatpush1.msra.mxu0 0.0
        %1246 = vmatprep.subr.mxu0 0.0
        %1247 = vmatpush1.msra.mxu0 0.0
        %1248 = vmatprep.subr.mxu0 0.0
        %1249 = vmatpush1.msra.mxu0 0.0
        %1250 = vmatprep.subr.mxu0 0.0
        %1251 = vmatpush1.msra.mxu0 0.0
        %1252 = vmatprep.subr.mxu0 0.0
        %1253 = vmatpush1.msra.mxu0 0.0
        %1254 = vmatprep.subr.mxu0 0.0
        %1255 = vmatpush1.msra.mxu0 0.0
        %1256 = vmatprep.subr.mxu0 0.0
        %1257 = vmatpush1.msra.mxu0 0.0
        %1258 = vmatprep.subr.mxu0 0.0
        %1259 = vmatpush1.msra.mxu0 0.0
        %1260 = vmatprep.subr.mxu0 0.0
        %1261 = vmatpush1.msra.mxu0 0.0
        %1262 = vmatprep.mubr.f32.mxu0 0.0
        %1263 = vmatmul.mubr.f32.gmra.mrb[0].mxu0 %v1196
        %v1264 = vpop.f32.mrb[0].mxu0
        %v1265 = vadd.f32 %v1193, %v1264
        %v1266 = vpop.f32.mrb[0].mxu0
        %1267 = vdwg.mxu0
        %v1268 = vadd.f32 %v1265, %v382
        %v1269 = vld [vmem:[%s5] sm:$0x1]
        %v1270 = vld [vmem:[%s6] sm:$0x1]
        %v1271 = vsel %vm383, %v1268, 0.0
        %1272 = vadd.xlane.f32.xlu0 %v1271
        %v1273 = vpop.xlane.xlu0 %1272
        %v1274 = vmul.f32 %v1273, %v387
        %v1275 = vsub.f32 %v1268, %v1274
        %v1276 = vmul.f32 %v1275, %v1275
        %v1277 = vsel %vm383, %v1276, 0.0
        %1278 = vadd.xlane.f32.xlu0 %v1277
        %v1279 = vpop.xlane.xlu0 %1278
        %v1280 = vmul.f32 %v1279, %v387
        %v1281 = vadd.f32 %v1280, 1e-05
        %v1282 = vrsqrt.pop %v1281
        %v1283 = vmul.f32 %v1275, %v1282
        %v1285 = vlaneseq
        %v1286 = vshrl.u32 %v1285, 7
        %v1287 = vsub.s32 0, %v1286
        %v1288 = vrot.slane %v1269, %v1287
        %v1290 = vmul.f32 %v1283, %v1288
        %v1292 = vlaneseq
        %v1293 = vshrl.u32 %v1292, 7
        %v1294 = vsub.s32 0, %v1293
        %v1295 = vrot.slane %v1270, %v1294
        %v1297 = vadd.f32 %v1290, %v1295
        %v1298 = vld [vmem:[%s7] sm:$0xff]
        %v1299 = vld [vmem:[%s7 + $0x8] sm:$0xff]
        %v1300 = vld [vmem:[%s7 + $0x10] sm:$0xff]
        %v1301 = vld [vmem:[%s7 + $0x18] sm:$0xff]
        %v1302 = vld [vmem:[%s8] sm:$0x1]
        %v1304 = vlaneseq
        %v1305 = vshrl.u32 %v1304, 7
        %v1306 = vsub.s32 0, %v1305
        %v1307 = vrot.slane %v1302, %v1306
        %v1310 = vsel %vm383, %v1297, 0
        %1312 = vmatprep.subr.mxu0 0.0
        %1313 = vmatpush1.msra.mxu0 %v1298
        %1314 = vmatprep.subr.mxu0 0.0
        %1315 = vmatpush1.msra.mxu0 %v1299
        %1316 = vmatprep.subr.mxu0 0.0
        %1317 = vmatpush1.msra.mxu0 %v1300
        %1318 = vmatprep.subr.mxu0 0.0
        %1319 = vmatpush1.msra.mxu0 %v1301
        %1320 = vmatprep.subr.mxu0 0.0
        %1321 = vmatpush1.msra.mxu0 0.0
        %1322 = vmatprep.subr.mxu0 0.0
        %1323 = vmatpush1.msra.mxu0 0.0
        %1324 = vmatprep.subr.mxu0 0.0
        %1325 = vmatpush1.msra.mxu0 0.0
        %1326 = vmatprep.subr.mxu0 0.0
        %1327 = vmatpush1.msra.mxu0 0.0
        %1328 = vmatprep.subr.mxu0 0.0
        %1329 = vmatpush1.msra.mxu0 0.0
        %1330 = vmatprep.subr.mxu0 0.0
        %1331 = vmatpush1.msra.mxu0 0.0
        %1332 = vmatprep.subr.mxu0 0.0
        %1333 = vmatpush1.msra.mxu0 0.0
        %1334 = vmatprep.subr.mxu0 0.0
        %1335 = vmatpush1.msra.mxu0 0.0
        %1336 = vmatprep.subr.mxu0 0.0
        %1337 = vmatpush1.msra.mxu0 0.0
        %1338 = vmatprep.subr.mxu0 0.0
        %1339 = vmatpush1.msra.mxu0 0.0
        %1340 = vmatprep.subr.mxu0 0.0
        %1341 = vmatpush1.msra.mxu0 0.0
        %1342 = vmatprep.subr.mxu0 0.0
        %1343 = vmatpush1.msra.mxu0 0.0
        %1344 = vmatprep.subr.mxu0 0.0
        %1345 = vmatpush1.msra.mxu0 0.0
        %1346 = vmatprep.subr.mxu0 0.0
        %1347 = vmatpush1.msra.mxu0 0.0
        %1348 = vmatprep.subr.mxu0 0.0
        %1349 = vmatpush1.msra.mxu0 0.0
        %1350 = vmatprep.subr.mxu0 0.0
        %1351 = vmatpush1.msra.mxu0 0.0
        %1352 = vmatprep.subr.mxu0 0.0
        %1353 = vmatpush1.msra.mxu0 0.0
        %1354 = vmatprep.subr.mxu0 0.0
        %1355 = vmatpush1.msra.mxu0 0.0
        %1356 = vmatprep.subr.mxu0 0.0
        %1357 = vmatpush1.msra.mxu0 0.0
        %1358 = vmatprep.subr.mxu0 0.0
        %1359 = vmatpush1.msra.mxu0 0.0
        %1360 = vmatprep.subr.mxu0 0.0
        %1361 = vmatpush1.msra.mxu0 0.0
        %1362 = vmatprep.subr.mxu0 0.0
        %1363 = vmatpush1.msra.mxu0 0.0
        %1364 = vmatprep.subr.mxu0 0.0
        %1365 = vmatpush1.msra.mxu0 0.0
        %1366 = vmatprep.subr.mxu0 0.0
        %1367 = vmatpush1.msra.mxu0 0.0
        %1368 = vmatprep.subr.mxu0 0.0
        %1369 = vmatpush1.msra.mxu0 0.0
        %1370 = vmatprep.subr.mxu0 0.0
        %1371 = vmatpush1.msra.mxu0 0.0
        %1372 = vmatprep.subr.mxu0 0.0
        %1373 = vmatpush1.msra.mxu0 0.0
        %1374 = vmatprep.subr.mxu0 0.0
        %1375 = vmatpush1.msra.mxu0 0.0
        %1376 = vmatprep.mubr.f32.mxu0 0.0
        %1377 = vmatmul.mubr.f32.gmra.mrb[0].mxu0 %v1310
        %v1378 = vpop.f32.mrb[0].mxu0
        %v1379 = vadd.f32 %v1307, %v1378
        %v1380 = vpop.f32.mrb[0].mxu0
        %1381 = vdwg.mxu0
        %v1382 = vmul.f32 %v1379, 0.5
        %v1383 = vrcp.pop 1.4142135
        %v1384 = vmul.f32 %v1379, %v1383
        %v1385 = verf.f32.pop %v1384
        %v1386 = vadd.f32 %v1385, 1.0
        %v1387 = vmul.f32 %v1382, %v1386
        %v1388 = vld [vmem:[%s9] sm:$0xff]
        %v1389 = vld [vmem:[%s9 + $0x8] sm:$0xff]
        %v1390 = vld [vmem:[%s9 + $0x10] sm:$0xff]
        %v1391 = vld [vmem:[%s9 + $0x18] sm:$0xff]
        %v1392 = vld [vmem:[%s9 + $0x20] sm:$0xff]
        %v1393 = vld [vmem:[%s9 + $0x28] sm:$0xff]
        %v1394 = vld [vmem:[%s9 + $0x30] sm:$0xff]
        %v1395 = vld [vmem:[%s9 + $0x38] sm:$0xff]
        %v1396 = vld [vmem:[%s9 + $0x40] sm:$0xff]
        %v1397 = vld [vmem:[%s9 + $0x48] sm:$0xff]
        %v1398 = vld [vmem:[%s9 + $0x50] sm:$0xff]
        %v1399 = vld [vmem:[%s9 + $0x58] sm:$0xff]
        %v1400 = vld [vmem:[%s9 + $0x60] sm:$0xff]
        %v1401 = vld [vmem:[%s9 + $0x68] sm:$0xff]
        %v1402 = vld [vmem:[%s9 + $0x70] sm:$0xff]
        %v1403 = vld [vmem:[%s9 + $0x78] sm:$0xff]
        %v1404 = vld [vmem:[%s10] sm:$0x1]
        %v1406 = vlaneseq
        %v1407 = vshrl.u32 %v1406, 7
        %v1408 = vsub.s32 0, %v1407
        %v1409 = vrot.slane %v1404, %v1408
        %1411 = vmatprep.subr.mxu0 0.0
        %1412 = vmatpush1.msra.mxu0 %v1388
        %1413 = vmatprep.subr.mxu0 0.0
        %1414 = vmatpush1.msra.mxu0 %v1389
        %1415 = vmatprep.subr.mxu0 0.0
        %1416 = vmatpush1.msra.mxu0 %v1390
        %1417 = vmatprep.subr.mxu0 0.0
        %1418 = vmatpush1.msra.mxu0 %v1391
        %1419 = vmatprep.subr.mxu0 0.0
        %1420 = vmatpush1.msra.mxu0 %v1392
        %1421 = vmatprep.subr.mxu0 0.0
        %1422 = vmatpush1.msra.mxu0 %v1393
        %1423 = vmatprep.subr.mxu0 0.0
        %1424 = vmatpush1.msra.mxu0 %v1394
        %1425 = vmatprep.subr.mxu0 0.0
        %1426 = vmatpush1.msra.mxu0 %v1395
        %1427 = vmatprep.subr.mxu0 0.0
        %1428 = vmatpush1.msra.mxu0 %v1396
        %1429 = vmatprep.subr.mxu0 0.0
        %1430 = vmatpush1.msra.mxu0 %v1397
        %1431 = vmatprep.subr.mxu0 0.0
        %1432 = vmatpush1.msra.mxu0 %v1398
        %1433 = vmatprep.subr.mxu0 0.0
        %1434 = vmatpush1.msra.mxu0 %v1399
        %1435 = vmatprep.subr.mxu0 0.0
        %1436 = vmatpush1.msra.mxu0 %v1400
        %1437 = vmatprep.subr.mxu0 0.0
        %1438 = vmatpush1.msra.mxu0 %v1401
        %1439 = vmatprep.subr.mxu0 0.0
        %1440 = vmatpush1.msra.mxu0 %v1402
        %1441 = vmatprep.subr.mxu0 0.0
        %1442 = vmatpush1.msra.mxu0 %v1403
        %1443 = vmatprep.subr.mxu0 0.0
        %1444 = vmatpush1.msra.mxu0 0.0
        %1445 = vmatprep.subr.mxu0 0.0
        %1446 = vmatpush1.msra.mxu0 0.0
        %1447 = vmatprep.subr.mxu0 0.0
        %1448 = vmatpush1.msra.mxu0 0.0
        %1449 = vmatprep.subr.mxu0 0.0
        %1450 = vmatpush1.msra.mxu0 0.0
        %1451 = vmatprep.subr.mxu0 0.0
        %1452 = vmatpush1.msra.mxu0 0.0
        %1453 = vmatprep.subr.mxu0 0.0
        %1454 = vmatpush1.msra.mxu0 0.0
        %1455 = vmatprep.subr.mxu0 0.0
        %1456 = vmatpush1.msra.mxu0 0.0
        %1457 = vmatprep.subr.mxu0 0.0
        %1458 = vmatpush1.msra.mxu0 0.0
        %1459 = vmatprep.subr.mxu0 0.0
        %1460 = vmatpush1.msra.mxu0 0.0
        %1461 = vmatprep.subr.mxu0 0.0
        %1462 = vmatpush1.msra.mxu0 0.0
        %1463 = vmatprep.subr.mxu0 0.0
        %1464 = vmatpush1.msra.mxu0 0.0
        %1465 = vmatprep.subr.mxu0 0.0
        %1466 = vmatpush1.msra.mxu0 0.0
        %1467 = vmatprep.subr.mxu0 0.0
        %1468 = vmatpush1.msra.mxu0 0.0
        %1469 = vmatprep.subr.mxu0 0.0
        %1470 = vmatpush1.msra.mxu0 0.0
        %1471 = vmatprep.subr.mxu0 0.0
        %1472 = vmatpush1.msra.mxu0 0.0
        %1473 = vmatprep.subr.mxu0 0.0
        %1474 = vmatpush1.msra.mxu0 0.0
        %1475 = vmatprep.mubr.f32.mxu0 0.0
        %1476 = vmatmul.mubr.f32.gmra.mrb[0].mxu0 %v1387
        %v1477 = vpop.f32.mrb[0].mxu0
        %v1478 = vadd.f32 %v1409, %v1477
        %v1479 = vpop.f32.mrb[0].mxu0
        %1480 = vdwg.mxu0
        %v1481 = vadd.f32 %v1478, %v1297
        %1482 = vst.msk [vmem:[%s377] sm:$0xff] %vm383, %v1481
        %s1483 = sand.u32 %s269, 1
        %s1484 = scalar_lea.sflag [#allocation3], %s1483
        %s1485 = sand.u32 %s269, 1
        %s1486 = smul.addr %s1485, 8
        %s1487 = scalar_lea.vmem [#allocation2], %s1486
        // Predicated region
        $region65: #{tpu_custom_call.1} parent=63 // pred_check
          %p1488 = pneg %p279
        $region66: #{tpu_custom_call.1} parent=63 // pred_check_branch
          %1490 = sbr.rel (%p1488) target = $region68
        $region67: #{tpu_custom_call.1} parent=63 // pred_region
          %s1492 = ssub.s32 128, 128
          %1493 = vsyncadd %s1484, %s1492
          %s1494 = smul.addr %s25, 128
          %s1495 = scalar_lea.hbm %s11, %s1494
          %s1497 = sshll.u32 %s1487, 4
          %s1498 = int_to_ptr.vmem [resolvable:$true] %s1497
          %1500 = dma.vmem_to_hbm [thread:$0]  %s1498, 128, %s1495, %s1484
        $region68: #{tpu_custom_call.1} parent=63 // pred_fallthru
          _
      $region64: #{tpu_custom_call.1} parent=5 // pred_fallthru
        _
      %p1501 = scmp.le.s32.totalorder 2, %s20
      // Predicated region
      $region69: #{tpu_custom_call.1} parent=5 // pred_check
        %p1502 = pneg %p1501
      $region70: #{tpu_custom_call.1} parent=5 // pred_check_branch
        %1504 = sbr.rel (%p1502) target = $region72
      $region71: #{tpu_custom_call.1} parent=5 // pred_region
        %s1505 = ssub.s32 %s20, 2
        // Predicated region
        $region73: #{tpu_custom_call.1} parent=71 // pred_check
          %p1506 = pneg %p285
        $region74: #{tpu_custom_call.1} parent=71 // pred_check_branch
          %1508 = sbr.rel (%p1506) target = $region76
        $region75: #{tpu_custom_call.1} parent=71 // pred_region
          %s1509 = sand.u32 %s270, 1
          %s1510 = scalar_lea.sflag [#allocation3], %s1509
          %s1511 = sand.u32 %s270, 1
          %s1512 = smul.addr %s1511, 8
          %s1513 = scalar_lea.vmem [#allocation2], %s1512
          %1514 = dma.done %s1510, 128
        $region76: #{tpu_custom_call.1} parent=71 // pred_fallthru
          _
      $region72: #{tpu_custom_call.1} parent=5 // pred_fallthru
        _
    $region6: #{tpu_custom_call.1} parent=1 // loop_footer
      %s24 = sadd.s32 1, %s20
    $region7: #{tpu_custom_call.1} parent=1 // loop_footer_branch
      %19 = sbr.rel target = $region3
    $region8: #{tpu_custom_call.1} parent=1 // loop_exit
      _
    %1515 = vsyncpa [#allocation3], 1
    %s1516 = scalar_lea.sflag [#allocation3], 1
    %1517 = vsyncpa %s1516, 1

</llo_original>
